<compile_context>
chip_gen: v5e
topology: v5e:2x2
jax: 0.10.0
libtpu: 0.0.40
codegen_flags: <defaults>
</compile_context>

<pallas_src>
import jax
import jax.numpy as jnp
from jax.experimental import pallas as pl
from jax.experimental.pallas import tpu as pltpu

BN_EPS = 1e-5
# Explicit scoped-VMEM budget: safe on v5e/v6e (128 MiB phys) and v7x (64 MiB).
_VMEM_LIMIT = 32 * 1024 * 1024


def _pick_l_tile(l):
    """Largest lane-friendly tile of the spatial axis (multiple of 128)."""
    for t in (512, 256, 128):
        if l % t == 0:
            return t
    return l  # full extent (always legal even when not a multiple of 128)


def _stats_kernel(x_ref, w1_ref, sum_ref, sq_ref):
    """Pass 1: accumulate per-hidden-channel sum / sum-of-squares of linear1."""
    @pl.when(jnp.logical_and(pl.program_id(0) == 0, pl.program_id(1) == 0))
    def _():
        sum_ref[...] = jnp.zeros_like(sum_ref)
        sq_ref[...] = jnp.zeros_like(sq_ref)

    x = x_ref[0].astype(jnp.bfloat16)                        # (C, LT)
    # h = W1 @ x : (H, C) @ (C, LT) -> (H, LT); bf16 MXU inputs, f32 accum.
    h = jnp.dot(w1_ref[...], x, preferred_element_type=jnp.float32)
    # BN reduction over (batch, L) == lane-axis reduce, accumulated over grid.
    sum_ref[...] += jnp.sum(h, axis=1, keepdims=True)        # (H, 1)
    sq_ref[...] += jnp.sum(h * h, axis=1, keepdims=True)     # (H, 1)


def _apply_kernel(x_ref, w1_ref, w2_ref, scale_ref, shift_ref, o_ref):
    """Pass 2: recompute linear1, fused BN scale/shift + ReLU, linear2, store."""
    x = x_ref[0].astype(jnp.bfloat16)                        # (C, LT)
    h = jnp.dot(w1_ref[...], x, preferred_element_type=jnp.float32)   # (H, LT)
    h = h * scale_ref[...] + shift_ref[...]                  # fused BN affine
    h = jnp.maximum(h, 0.0).astype(jnp.bfloat16)             # ReLU
    y = jnp.dot(w2_ref[...], h, preferred_element_type=jnp.float32)   # (C, LT)
    o_ref[0] = y.astype(o_ref.dtype)                         # lane-dense store


def predictor_forward(x, w1, w2, gamma, beta, eps=BN_EPS):
    """x: (b, c, w, h) NCHW; w1: (H, C); w2: (C, H); gamma/beta: (H,)."""
    b, c, w, h = x.shape
    l = w * h
    hd = w1.shape[0]
    lt = _pick_l_tile(l)
    n_lt = l // lt

    # NCHW -> (b, C, L): a pure reshape, no transpose / extra HBM traffic.
    x3 = x.reshape(b, c, l)
    w1b = w1.astype(jnp.bfloat16)     # (H, C) MXU input (PyTorch layout as-is)
    w2b = w2.astype(jnp.bfloat16)     # (C, H) MXU input (PyTorch layout as-is)

    grid = (b, n_lt)
    x_spec = pl.BlockSpec((1, c, lt), lambda i, j: (i, 0, j))
    w1_spec = pl.BlockSpec((hd, c), lambda i, j: (0, 0))
    w2_spec = pl.BlockSpec((c, hd), lambda i, j: (0, 0))
    col_spec = pl.BlockSpec((hd, 1), lambda i, j: (0, 0))

    # ---- Pass 1: BatchNorm batch statistics (full-N reduction) -------------
    sums, sqs = pl.pallas_call(
        _stats_kernel,
        out_shape=(jax.ShapeDtypeStruct((hd, 1), jnp.float32),
                   jax.ShapeDtypeStruct((hd, 1), jnp.float32)),
        grid_spec=pltpu.PrefetchScalarGridSpec(
            num_scalar_prefetch=0,
            grid=grid,
            in_specs=[x_spec, w1_spec],
            out_specs=(col_spec, col_spec)),
        compiler_params=pltpu.CompilerParams(
            dimension_semantics=("arbitrary", "arbitrary"),
            vmem_limit_bytes=_VMEM_LIMIT),
    )(x3, w1b)

    # Tiny (H, 1) vector math in plain JAX: fold BN into a single scale/shift.
    # Note: var = E[x^2] - E[x]^2 accumulated in f32; clamped to >= 0 to guard
    # against cancellation-induced tiny negatives.
    n = float(b * l)
    mean = sums / n
    var = jnp.maximum(sqs / n - mean * mean, 0.0)   # biased variance (train BN)
    inv_std = jax.lax.rsqrt(var + eps)
    scale = inv_std * gamma.reshape(-1, 1).astype(jnp.float32)    # (H, 1)
    shift = beta.reshape(-1, 1).astype(jnp.float32) - mean * scale

    # ---- Pass 2: normalize + ReLU + linear2 over independent tiles ---------
    out3 = pl.pallas_call(
        _apply_kernel,
        out_shape=jax.ShapeDtypeStruct((b, c, l), x.dtype),
        grid_spec=pltpu.PrefetchScalarGridSpec(
            num_scalar_prefetch=0,
            grid=grid,
            in_specs=[x_spec, w1_spec, w2_spec, col_spec, col_spec],
            out_specs=x_spec),
        compiler_params=pltpu.CompilerParams(
            dimension_semantics=("parallel", "parallel"),   # megacore on v7x
            vmem_limit_bytes=_VMEM_LIMIT),
    )(x3, w1b, w2b, scale, shift)

    # (b, C, L) -> NCHW: pure reshape, no transpose.
    return out3.reshape(b, c, w, h)


def predictor_ref(x, w1, w2, gamma, beta, eps=BN_EPS):
    """Pure-JAX f32 reference mirroring the PyTorch forward exactly."""
    b, c, w, h = x.shape
    t = jnp.transpose(x.reshape(b, c, w * h), (0, 2, 1))              # (b, L, C)
    o = jnp.einsum("blc,hc->blh", t, w1)                              # (b, L, H)
    mean = jnp.mean(o, axis=(0, 1), keepdims=True)
    var = jnp.mean((o - mean) ** 2, axis=(0, 1), keepdims=True)       # biased
    o = (o - mean) / jnp.sqrt(var + eps)
    o = o * gamma.reshape(1, 1, -1) + beta.reshape(1, 1, -1)
    o = jnp.maximum(o, 0.0)
    o = jnp.einsum("blh,ch->blc", o, w2)                              # (b, L, C)
    return jnp.transpose(o, (0, 2, 1)).reshape(b, c, w, h)


if __name__ == "__main__":
    # Small shapes consistent with the module: NCHW input, in_dim = C.
    batch, in_dim, spatial = 2, 32, 16
    dim_hidden = 256

    key = jax.random.PRNGKey(0)
    kx, k1, k2, kg, kb = jax.random.split(key, 5)

    x = jax.random.normal(kx, (batch, in_dim, spatial, spatial), jnp.float32)
    # nn.Linear(in_dim, dim_hidden, bias=False).weight -> (dim_hidden, in_dim)
    w1 = jax.random.normal(k1, (dim_hidden, in_dim), jnp.float32) * (1.0 / in_dim ** 0.5)
    # nn.Linear(dim_hidden, in_dim, bias=False).weight -> (in_dim, dim_hidden)
    w2 = jax.random.normal(k2, (in_dim, dim_hidden), jnp.float32) * (1.0 / dim_hidden ** 0.5)
    # BatchNorm affine params (deterministic, non-trivial)
    gamma = 1.0 + 0.1 * jax.random.normal(kg, (dim_hidden,), jnp.float32)
    beta = 0.1 * jax.random.normal(kb, (dim_hidden,), jnp.float32)

    out = jax.jit(predictor_forward)(x, w1, w2, gamma, beta)
    jax.block_until_ready(out)

    ref = predictor_ref(x, w1, w2, gamma, beta)
    assert out.shape == x.shape
    # bf16 MXU inputs (f32 accumulation) loosen agreement vs. the f32
    # reference; tolerance relaxed accordingly.
    assert jnp.allclose(out, ref, atol=5e-2, rtol=5e-2), "mismatch vs reference"

    print("KERNEL_OK")
</pallas_src>

<mosaic_0001>
module attributes {stable_mosaic.version = 11 : i64} {
  func.func @_stats_kernel(%arg0: i32, %arg1: i32, %arg2: memref<1x32x256xf32, #tpu.memory_space<vmem>>, %arg3: memref<256x32xbf16, #tpu.memory_space<vmem>>, %arg4: memref<256x1xf32, #tpu.memory_space<vmem>>, %arg5: memref<256x1xf32, #tpu.memory_space<vmem>>) attributes {dimension_semantics = [#tpu.dimension_semantics<arbitrary>, #tpu.dimension_semantics<arbitrary>], iteration_bounds = array<i64: 2, 1>, scalar_prefetch = 0 : i64, scratch_operands = 0 : i64, tpu.core_type = #tpu.core_type<tc>, window_params = [{transform_indices = @transform_0, window_bounds = array<i64: 1, 32, 256>}, {pipeline_mode = #tpu.pipeline_mode<synchronous>, transform_indices = @transform_1, window_bounds = array<i64: 256, 32>}, {pipeline_mode = #tpu.pipeline_mode<synchronous>, transform_indices = @transform_2, window_bounds = array<i64: 256, 1>}, {pipeline_mode = #tpu.pipeline_mode<synchronous>, transform_indices = @transform_3, window_bounds = array<i64: 256, 1>}]} {
    %c0_i32 = arith.constant 0 : i32
    %0 = arith.cmpi eq, %arg0, %c0_i32 : i32
    %c0_i32_0 = arith.constant 0 : i32
    %1 = arith.cmpi eq, %arg1, %c0_i32_0 : i32
    %2 = arith.andi %0, %1 : i1
    %3 = arith.extui %2 : i1 to i32
    %c0_i32_1 = arith.constant 0 : i32
    %4 = arith.cmpi ne, %3, %c0_i32_1 : i32
    scf.if %4 {
      %cst_16 = arith.constant 0.000000e+00 : f32
      %21 = vector.broadcast %cst_16 : f32 to vector<256x1xf32>
      %c0_17 = arith.constant 0 : index
      %c0_18 = arith.constant 0 : index
      %22 = vector.load %arg4[%c0_17, %c0_18] : memref<256x1xf32, #tpu.memory_space<vmem>>, vector<256x1xf32>
      tpu.vector_store %arg4[%c0_17, %c0_18], %21 {strides = array<i32>} : memref<256x1xf32, #tpu.memory_space<vmem>>, vector<256x1xf32>,
      %cst_19 = arith.constant 0.000000e+00 : f32
      %23 = vector.broadcast %cst_19 : f32 to vector<256x1xf32>
      %c0_20 = arith.constant 0 : index
      %c0_21 = arith.constant 0 : index
      %24 = vector.load %arg5[%c0_20, %c0_21] : memref<256x1xf32, #tpu.memory_space<vmem>>, vector<256x1xf32>
      tpu.vector_store %arg5[%c0_20, %c0_21], %23 {strides = array<i32>} : memref<256x1xf32, #tpu.memory_space<vmem>>, vector<256x1xf32>,
    } else {
    }
    %c0 = arith.constant 0 : index
    %c0_2 = arith.constant 0 : index
    %c0_3 = arith.constant 0 : index
    %5 = vector.load %arg2[%c0, %c0_2, %c0_3] : memref<1x32x256xf32, #tpu.memory_space<vmem>>, vector<1x32x256xf32>
    %6 = vector.shape_cast %5 : vector<1x32x256xf32> to vector<32x256xf32>
    %7 = arith.truncf %6 : vector<32x256xf32> to vector<32x256xbf16>
    %c0_4 = arith.constant 0 : index
    %c0_5 = arith.constant 0 : index
    %8 = vector.load %arg3[%c0_4, %c0_5] : memref<256x32xbf16, #tpu.memory_space<vmem>>, vector<256x32xbf16>
    %cst = arith.constant dense<0.000000e+00> : vector<256x256xf32>
    %9 = tpu.matmul %8, %7, %cst {dimension_numbers = #tpu.dot_dimension_numbers<[1], [0], [0], [1], [0, 0, 1, 1], [], []>} : vector<256x32xbf16>, vector<32x256xbf16>, vector<256x256xf32> -> vector<256x256xf32>
    %c0_6 = arith.constant 0 : index
    %c0_7 = arith.constant 0 : index
    %10 = vector.load %arg4[%c0_6, %c0_7] : memref<256x1xf32, #tpu.memory_space<vmem>>, vector<256x1xf32>
    %cst_8 = arith.constant dense<0.000000e+00> : vector<256xf32>
    %11 = vector.multi_reduction <add>, %9, %cst_8 [1] : vector<256x256xf32> to vector<256xf32>
    %12 = vector.shape_cast %11 : vector<256xf32> to vector<256x1xf32>
    %13 = arith.addf %10, %12 : vector<256x1xf32>
    %c0_9 = arith.constant 0 : index
    %c0_10 = arith.constant 0 : index
    %14 = vector.load %arg4[%c0_9, %c0_10] : memref<256x1xf32, #tpu.memory_space<vmem>>, vector<256x1xf32>
    tpu.vector_store %arg4[%c0_9, %c0_10], %13 {strides = array<i32>} : memref<256x1xf32, #tpu.memory_space<vmem>>, vector<256x1xf32>,
    %c0_11 = arith.constant 0 : index
    %c0_12 = arith.constant 0 : index
    %15 = vector.load %arg5[%c0_11, %c0_12] : memref<256x1xf32, #tpu.memory_space<vmem>>, vector<256x1xf32>
    %16 = arith.mulf %9, %9 : vector<256x256xf32>
    %cst_13 = arith.constant dense<0.000000e+00> : vector<256xf32>
    %17 = vector.multi_reduction <add>, %16, %cst_13 [1] : vector<256x256xf32> to vector<256xf32>
    %18 = vector.shape_cast %17 : vector<256xf32> to vector<256x1xf32>
    %19 = arith.addf %15, %18 : vector<256x1xf32>
    %c0_14 = arith.constant 0 : index
    %c0_15 = arith.constant 0 : index
    %20 = vector.load %arg5[%c0_14, %c0_15] : memref<256x1xf32, #tpu.memory_space<vmem>>, vector<256x1xf32>
    tpu.vector_store %arg5[%c0_14, %c0_15], %19 {strides = array<i32>} : memref<256x1xf32, #tpu.memory_space<vmem>>, vector<256x1xf32>,
    return
  }
  func.func @transform_0(%arg0: i32, %arg1: i32) -> (i32, i32, i32) {
    %c0_i32 = arith.constant 0 : i32
    %c0_i32_0 = arith.constant 0 : i32
    return %arg0, %c0_i32, %arg1 : i32, i32, i32
  }
  func.func @transform_1(%arg0: i32, %arg1: i32) -> (i32, i32) {
    %c0_i32 = arith.constant 0 : i32
    %c0_i32_0 = arith.constant 0 : i32
    %c0_i32_1 = arith.constant 0 : i32
    return %c0_i32, %c0_i32_0 : i32, i32
  }
  func.func @transform_2(%arg0: i32, %arg1: i32) -> (i32, i32) {
    %c0_i32 = arith.constant 0 : i32
    %c0_i32_0 = arith.constant 0 : i32
    %c0_i32_1 = arith.constant 0 : i32
    return %c0_i32, %c0_i32_0 : i32, i32
  }
  func.func @transform_3(%arg0: i32, %arg1: i32) -> (i32, i32) {
    %c0_i32 = arith.constant 0 : i32
    %c0_i32_0 = arith.constant 0 : i32
    %c0_i32_1 = arith.constant 0 : i32
    return %c0_i32, %c0_i32_0 : i32, i32
  }
}

module attributes {stable_mosaic.version = 11 : i64} {
  func.func @_apply_kernel(%arg0: i32, %arg1: i32, %arg2: memref<1x32x256xf32, #tpu.memory_space<vmem>>, %arg3: memref<256x32xbf16, #tpu.memory_space<vmem>>, %arg4: memref<32x256xbf16, #tpu.memory_space<vmem>>, %arg5: memref<256x1xf32, #tpu.memory_space<vmem>>, %arg6: memref<256x1xf32, #tpu.memory_space<vmem>>, %arg7: memref<1x32x256xf32, #tpu.memory_space<vmem>>) attributes {dimension_semantics = [#tpu.dimension_semantics<parallel>, #tpu.dimension_semantics<parallel>], iteration_bounds = array<i64: 2, 1>, scalar_prefetch = 0 : i64, scratch_operands = 0 : i64, tpu.core_type = #tpu.core_type<tc>, window_params = [{transform_indices = @transform_0, window_bounds = array<i64: 1, 32, 256>}, {pipeline_mode = #tpu.pipeline_mode<synchronous>, transform_indices = @transform_1, window_bounds = array<i64: 256, 32>}, {pipeline_mode = #tpu.pipeline_mode<synchronous>, transform_indices = @transform_2, window_bounds = array<i64: 32, 256>}, {pipeline_mode = #tpu.pipeline_mode<synchronous>, transform_indices = @transform_3, window_bounds = array<i64: 256, 1>}, {pipeline_mode = #tpu.pipeline_mode<synchronous>, transform_indices = @transform_4, window_bounds = array<i64: 256, 1>}, {transform_indices = @transform_5, window_bounds = array<i64: 1, 32, 256>}]} {
    %c0 = arith.constant 0 : index
    %c0_0 = arith.constant 0 : index
    %c0_1 = arith.constant 0 : index
    %0 = vector.load %arg2[%c0, %c0_0, %c0_1] : memref<1x32x256xf32, #tpu.memory_space<vmem>>, vector<1x32x256xf32>
    %1 = vector.shape_cast %0 : vector<1x32x256xf32> to vector<32x256xf32>
    %2 = arith.truncf %1 : vector<32x256xf32> to vector<32x256xbf16>
    %c0_2 = arith.constant 0 : index
    %c0_3 = arith.constant 0 : index
    %3 = vector.load %arg3[%c0_2, %c0_3] : memref<256x32xbf16, #tpu.memory_space<vmem>>, vector<256x32xbf16>
    %cst = arith.constant dense<0.000000e+00> : vector<256x256xf32>
    %4 = tpu.matmul %3, %2, %cst {dimension_numbers = #tpu.dot_dimension_numbers<[1], [0], [0], [1], [0, 0, 1, 1], [], []>} : vector<256x32xbf16>, vector<32x256xbf16>, vector<256x256xf32> -> vector<256x256xf32>
    %c0_4 = arith.constant 0 : index
    %c0_5 = arith.constant 0 : index
    %5 = vector.load %arg5[%c0_4, %c0_5] : memref<256x1xf32, #tpu.memory_space<vmem>>, vector<256x1xf32>
    %6 = vector.broadcast %5 : vector<256x1xf32> to vector<256x256xf32>
    %7 = arith.mulf %4, %6 : vector<256x256xf32>
    %c0_6 = arith.constant 0 : index
    %c0_7 = arith.constant 0 : index
    %8 = vector.load %arg6[%c0_6, %c0_7] : memref<256x1xf32, #tpu.memory_space<vmem>>, vector<256x1xf32>
    %9 = vector.broadcast %8 : vector<256x1xf32> to vector<256x256xf32>
    %10 = arith.addf %7, %9 : vector<256x256xf32>
    %cst_8 = arith.constant 0.000000e+00 : f32
    %11 = vector.broadcast %cst_8 : f32 to vector<256x256xf32>
    %12 = arith.maximumf %10, %11 : vector<256x256xf32>
    %13 = arith.truncf %12 : vector<256x256xf32> to vector<256x256xbf16>
    %c0_9 = arith.constant 0 : index
    %c0_10 = arith.constant 0 : index
    %14 = vector.load %arg4[%c0_9, %c0_10] : memref<32x256xbf16, #tpu.memory_space<vmem>>, vector<32x256xbf16>
    %cst_11 = arith.constant dense<0.000000e+00> : vector<32x256xf32>
    %15 = tpu.matmul %14, %13, %cst_11 {dimension_numbers = #tpu.dot_dimension_numbers<[1], [0], [0], [1], [0, 0, 1, 1], [], []>} : vector<32x256xbf16>, vector<256x256xbf16>, vector<32x256xf32> -> vector<32x256xf32>
    %c0_12 = arith.constant 0 : index
    %c0_13 = arith.constant 0 : index
    %c0_14 = arith.constant 0 : index
    %16 = vector.load %arg7[%c0_12, %c0_13, %c0_14] : memref<1x32x256xf32, #tpu.memory_space<vmem>>, vector<1x32x256xf32>
    %17 = vector.shape_cast %16 : vector<1x32x256xf32> to vector<32x256xf32>
    %18 = vector.shape_cast %15 : vector<32x256xf32> to vector<1x32x256xf32>
    tpu.vector_store %arg7[%c0_12, %c0_13, %c0_14], %18 {strides = array<i32>} : memref<1x32x256xf32, #tpu.memory_space<vmem>>, vector<1x32x256xf32>,
    return
  }
  func.func @transform_0(%arg0: i32, %arg1: i32) -> (i32, i32, i32) {
    %c0_i32 = arith.constant 0 : i32
    %c0_i32_0 = arith.constant 0 : i32
    return %arg0, %c0_i32, %arg1 : i32, i32, i32
  }
  func.func @transform_1(%arg0: i32, %arg1: i32) -> (i32, i32) {
    %c0_i32 = arith.constant 0 : i32
    %c0_i32_0 = arith.constant 0 : i32
    %c0_i32_1 = arith.constant 0 : i32
    return %c0_i32, %c0_i32_0 : i32, i32
  }
  func.func @transform_2(%arg0: i32, %arg1: i32) -> (i32, i32) {
    %c0_i32 = arith.constant 0 : i32
    %c0_i32_0 = arith.constant 0 : i32
    %c0_i32_1 = arith.constant 0 : i32
    return %c0_i32, %c0_i32_0 : i32, i32
  }
  func.func @transform_3(%arg0: i32, %arg1: i32) -> (i32, i32) {
    %c0_i32 = arith.constant 0 : i32
    %c0_i32_0 = arith.constant 0 : i32
    %c0_i32_1 = arith.constant 0 : i32
    return %c0_i32, %c0_i32_0 : i32, i32
  }
  func.func @transform_4(%arg0: i32, %arg1: i32) -> (i32, i32) {
    %c0_i32 = arith.constant 0 : i32
    %c0_i32_0 = arith.constant 0 : i32
    %c0_i32_1 = arith.constant 0 : i32
    return %c0_i32, %c0_i32_0 : i32, i32
  }
  func.func @transform_5(%arg0: i32, %arg1: i32) -> (i32, i32, i32) {
    %c0_i32 = arith.constant 0 : i32
    %c0_i32_0 = arith.constant 0 : i32
    return %arg0, %c0_i32, %arg1 : i32, i32, i32
  }
}

</mosaic_0001>

<llo_original>
// kernel: predictor_forward.2
$region0: #{predictor_forward.2}
  #allocation0 [shape = 'u32[]', space=smem, size = 0x4, offset = 0x4, fixed_abs, tag = 'smem constant byte address 0x4 - core index']
  #allocation1 [shape = 'u32[72,128]{1,0:T(1,128)}', space=vmem, size = 0x9000, scoped, tag = 'internal scratch']
  %s0 = inlined_call_operand.vmem [shape: f32[2,32,256], index: 0, kind: input, shape index: {}]
  %s1 = inlined_call_operand.vmem [shape: bf16[256,32], index: 1, kind: input, shape index: {}]
  %s2 = inlined_call_operand.vmem [shape: f32[256,1], index: 2, kind: output, shape index: {0}]
  %s3 = inlined_call_operand.vmem [shape: f32[256,1], index: 3, kind: output, shape index: {1}]
  %4 = xla_tuple %s2, %s3
  %s5 = sld [smem:[#allocation0]]
  $region53: #{predictor_forward.2} parent=0
    _
  %s7 = ssub.s32 1, %s5
  %s8 = scalar_select 0, %s7, %s5
  loop: start=0, step=1, limit=4
  $region2: #{predictor_forward.2} parent=0 // loop_pre_header
    _
  $region3: #{predictor_forward.2} parent=0 // loop_header
    %s10 = sphi 0, %s14
    %p11 = scmp.ge.s32.totalorder %s10, 4
    %s17 = sphi 0, %s29
    %s18 = sphi 0, %s25
    %s19 = sphi 0, %s17
    %s20 = sphi 0, %s18
    %s21 = sphi 0, %s19
    %s22 = sphi 0, %s20
    %s34 = sphi 0, %s36
    %s37 = sphi 0, %s34
    %s38 = sphi 0, %s37
    %s54 = sphi 0, %s38
    %s58 = sphi 0, %s58
    %s60 = sphi 0, %s58
    %s61 = sphi 0, %s60
    %s75 = sphi 0, %s61
    %s79 = sphi 0, %s79
    %s81 = sphi 0, %s79
    %s82 = sphi 0, %s81
    %s96 = sphi 0, %s82
    %s100 = sphi 0, %s100
    %s102 = sphi 0, %s100
    %s103 = sphi 0, %s102
    %s117 = sphi 0, %s103
  $region4: #{predictor_forward.2} parent=0 // loop_header_branch
    %13 = sbr.rel (%p11) target = $region8
  $region5: #{predictor_forward.2} parent=0 // loop_body
    %s15 = ssub.s32 %s10, 1
    %s16 = ssub.s32 %s10, 2
    %s23 = sadd.s32 1, %s18
    %p24 = scmp.ge.s32.totalorder %s23, 1
    %s25 = scalar_select %p24, 0, %s23
    %s26 = sadd.s32 1, %s17
    %s27 = scalar_select %p24, %s26, %s17
    %p28 = scmp.ge.s32.totalorder %s27, 2
    %s29 = scalar_select %p28, 0, %s27
    %s30 = ssub.s32 %s17, %s29
    %s31 = ssub.s32 %s18, %s25
    %s32 = sor.u32 %s30, %s31
    %p33 = scmp.eq.s32.totalorder %s32, 0
    %s35 = sadd.s32 %s34, 1
    %s36 = scalar_select %p33, %s34, %s35
    %p39 = pneg %p33
    %p40 = scmp.eq.s32.totalorder %s10, 1
    %p41 = por %p39, %p40
    %p42 = scmp.ne.s32.totalorder %s34, %s37
    %p43 = scmp.eq.s32.totalorder %s10, 0
    %p44 = por %p42, %p43
    %p45 = scmp.ne.s32.totalorder %s34, %s37
    %p46 = scmp.eq.s32.totalorder %s15, 1
    %p47 = por %p45, %p46
    %p48 = scmp.ne.s32.totalorder %s37, %s38
    %p49 = scmp.eq.s32.totalorder %s15, 0
    %p50 = por %p48, %p49
    %p51 = scmp.ne.s32.totalorder %s37, %s38
    %p52 = scmp.eq.s32.totalorder %s16, 1
    %p53 = por %p51, %p52
    %p55 = scmp.ne.s32.totalorder %s38, %s54
    %p56 = scmp.eq.s32.totalorder %s16, 0
    %p57 = por %p55, %p56
    %s59 = sadd.s32 %s58, 1
    %p62 = scmp.eq.s32.totalorder %s10, 1
    %p63 = scmp.ne.s32.totalorder %s58, %s60
    %p64 = scmp.eq.s32.totalorder %s10, 0
    %p65 = por %p63, %p64
    %p66 = scmp.ne.s32.totalorder %s58, %s60
    %p67 = scmp.eq.s32.totalorder %s15, 1
    %p68 = por %p66, %p67
    %p69 = scmp.ne.s32.totalorder %s60, %s61
    %p70 = scmp.eq.s32.totalorder %s15, 0
    %p71 = por %p69, %p70
    %p72 = scmp.ne.s32.totalorder %s60, %s61
    %p73 = scmp.eq.s32.totalorder %s16, 1
    %p74 = por %p72, %p73
    %p76 = scmp.ne.s32.totalorder %s61, %s75
    %p77 = scmp.eq.s32.totalorder %s16, 0
    %p78 = por %p76, %p77
    %s80 = sadd.s32 %s79, 1
    %p83 = scmp.eq.s32.totalorder %s10, 1
    %p84 = scmp.ne.s32.totalorder %s79, %s81
    %p85 = scmp.eq.s32.totalorder %s10, 0
    %p86 = por %p84, %p85
    %p87 = scmp.ne.s32.totalorder %s79, %s81
    %p88 = scmp.eq.s32.totalorder %s15, 1
    %p89 = por %p87, %p88
    %p90 = scmp.ne.s32.totalorder %s81, %s82
    %p91 = scmp.eq.s32.totalorder %s15, 0
    %p92 = por %p90, %p91
    %p93 = scmp.ne.s32.totalorder %s81, %s82
    %p94 = scmp.eq.s32.totalorder %s16, 1
    %p95 = por %p93, %p94
    %p97 = scmp.ne.s32.totalorder %s82, %s96
    %p98 = scmp.eq.s32.totalorder %s16, 0
    %p99 = por %p97, %p98
    %s101 = sadd.s32 %s100, 1
    %p104 = scmp.eq.s32.totalorder %s10, 1
    %p105 = scmp.ne.s32.totalorder %s100, %s102
    %p106 = scmp.eq.s32.totalorder %s10, 0
    %p107 = por %p105, %p106
    %p108 = scmp.ne.s32.totalorder %s100, %s102
    %p109 = scmp.eq.s32.totalorder %s15, 1
    %p110 = por %p108, %p109
    %p111 = scmp.ne.s32.totalorder %s102, %s103
    %p112 = scmp.eq.s32.totalorder %s15, 0
    %p113 = por %p111, %p112
    %p114 = scmp.ne.s32.totalorder %s102, %s103
    %p115 = scmp.eq.s32.totalorder %s16, 1
    %p116 = por %p114, %p115
    %p118 = scmp.ne.s32.totalorder %s103, %s117
    %p119 = scmp.eq.s32.totalorder %s16, 0
    %p120 = por %p118, %p119
    %p121 = scmp.le.s32.totalorder 1, %s10
    %p122 = scmp.lt.s32.totalorder %s10, 3
    %p123 = pnand %p121, %p122
    %p124 = pneg %p123
    // Predicated region
    $region9: #{predictor_forward.2} parent=5 // pred_check
      _
    $region10: #{predictor_forward.2} parent=5 // pred_check_branch
      %126 = sbr.rel (%p123) target = $region12
    $region11: #{predictor_forward.2} parent=5 // pred_region
      %s127 = ssub.s32 %s10, 1
      // Predicated region
      $region13: #{predictor_forward.2} parent=11 // pred_check
        %p128 = pneg %p71
      $region14: #{predictor_forward.2} parent=11 // pred_check_branch
        %130 = sbr.rel (%p128) target = $region16
      $region15: #{predictor_forward.2} parent=11 // pred_region
        _
      $region16: #{predictor_forward.2} parent=11 // pred_fallthru
        _
    $region12: #{predictor_forward.2} parent=5 // pred_fallthru
      _
    %p131 = scmp.lt.s32.totalorder %s10, 2
    // Predicated region
    $region17: #{predictor_forward.2} parent=5 // pred_check
      %p132 = pneg %p131
    $region18: #{predictor_forward.2} parent=5 // pred_check_branch
      %134 = sbr.rel (%p132) target = $region20
    $region19: #{predictor_forward.2} parent=5 // pred_region
      // Predicated region
      $region21: #{predictor_forward.2} parent=19 // pred_check
        %p135 = pneg %p44
      $region22: #{predictor_forward.2} parent=19 // pred_check_branch
        %137 = sbr.rel (%p135) target = $region24
      $region23: #{predictor_forward.2} parent=19 // pred_region
        %s138 = smul.u32 2, %s18
        %p139 = scmp.lt.s32.totalorder %s17, 1
        %s140 = scalar_select %p139, %s17, 1
        %p141 = scmp.lt.s32.totalorder %s138, 1
        %s142 = scalar_select %p141, %s138, 1
        %s143 = smul.addr %s140, 8
        %s144 = sadd.s32 %s142, %s143
        %s145 = smul.addr %s144, 8
        %s146 = scalar_lea.vmem %s0, %s145
        %s147 = smul.u32 2, %s18
      $region24: #{predictor_forward.2} parent=19 // pred_fallthru
        _
    $region20: #{predictor_forward.2} parent=5 // pred_fallthru
      _
    %p148 = scmp.le.s32.totalorder 1, %s10
    %p149 = scmp.lt.s32.totalorder %s10, 3
    %p150 = pnand %p148, %p149
    %p151 = pneg %p150
    // Predicated region
    $region25: #{predictor_forward.2} parent=5 // pred_check
      _
    $region26: #{predictor_forward.2} parent=5 // pred_check_branch
      %153 = sbr.rel (%p150) target = $region28
    $region27: #{predictor_forward.2} parent=5 // pred_region
      %s154 = ssub.s32 %s10, 1
      %s155 = smul.u32 2, %s20
      %p156 = scmp.lt.s32.totalorder %s19, 1
      %s157 = scalar_select %p156, %s19, 1
      %p158 = scmp.lt.s32.totalorder %s155, 1
      %s159 = scalar_select %p158, %s155, 1
      %s160 = smul.addr %s157, 8
      %s161 = sadd.s32 %s159, %s160
      %s162 = smul.addr %s161, 8
      %s163 = scalar_lea.vmem %s0, %s162
      %p164 = pneg %p50
      %p165 = pneg %p47
      %p166 = pneg %p71
      %p167 = pneg %p68
      %p168 = pneg %p92
      %p169 = pneg %p89
      %p170 = pneg %p113
      %p171 = pneg %p110
      %s172 = smul.u32 2, %s20
      %p173 = scmp.lt.s32.totalorder %s19, 1
      %s174 = scalar_select %p173, %s19, 1
      %p175 = scmp.lt.s32.totalorder %s172, 1
      %s176 = scalar_select %p175, %s172, 1
      %s177 = smul.addr %s174, 8
      %s178 = sadd.s32 %s176, %s177
      %s179 = smul.addr %s178, 8
      %s180 = scalar_lea.vmem %s0, %s179
      %s181 = smul.u32 2, %s20
      %p183 = scmp.eq.s32.totalorder %s19, 0
      %p184 = scmp.eq.s32.totalorder %s20, 0
      %p185 = pnand %p183, %p184
      %p186 = pneg %p185
      // Predicated region
      $region29: #{predictor_forward.2} parent=27 // pred_check
        _
      $region30: #{predictor_forward.2} parent=27 // pred_check_branch
        %188 = sbr.rel (%p185) target = $region32
      $region31: #{predictor_forward.2} parent=27 // pred_region
        %vm189 = vcmask 7168
        %190 = vst.msk [vmem:[%s2] sm:$0xff] %vm189, 0.0
        %191 = vst.msk [vmem:[%s2 + $0x8] sm:$0xff] %vm189, 0.0
        %192 = vst.msk [vmem:[%s2 + $0x10] sm:$0xff] %vm189, 0.0
        %193 = vst.msk [vmem:[%s2 + $0x18] sm:$0xff] %vm189, 0.0
        %194 = vst.msk [vmem:[%s2 + $0x20] sm:$0xff] %vm189, 0.0
        %195 = vst.msk [vmem:[%s2 + $0x28] sm:$0xff] %vm189, 0.0
        %196 = vst.msk [vmem:[%s2 + $0x30] sm:$0xff] %vm189, 0.0
        %197 = vst.msk [vmem:[%s2 + $0x38] sm:$0xff] %vm189, 0.0
        %198 = vst.msk [vmem:[%s2 + $0x40] sm:$0xff] %vm189, 0.0
        %199 = vst.msk [vmem:[%s2 + $0x48] sm:$0xff] %vm189, 0.0
        %200 = vst.msk [vmem:[%s2 + $0x50] sm:$0xff] %vm189, 0.0
        %201 = vst.msk [vmem:[%s2 + $0x58] sm:$0xff] %vm189, 0.0
        %202 = vst.msk [vmem:[%s2 + $0x60] sm:$0xff] %vm189, 0.0
        %203 = vst.msk [vmem:[%s2 + $0x68] sm:$0xff] %vm189, 0.0
        %204 = vst.msk [vmem:[%s2 + $0x70] sm:$0xff] %vm189, 0.0
        %205 = vst.msk [vmem:[%s2 + $0x78] sm:$0xff] %vm189, 0.0
        %206 = vst.msk [vmem:[%s2 + $0x80] sm:$0xff] %vm189, 0.0
        %207 = vst.msk [vmem:[%s2 + $0x88] sm:$0xff] %vm189, 0.0
        %208 = vst.msk [vmem:[%s2 + $0x90] sm:$0xff] %vm189, 0.0
        %209 = vst.msk [vmem:[%s2 + $0x98] sm:$0xff] %vm189, 0.0
        %210 = vst.msk [vmem:[%s2 + $0xa0] sm:$0xff] %vm189, 0.0
        %211 = vst.msk [vmem:[%s2 + $0xa8] sm:$0xff] %vm189, 0.0
        %212 = vst.msk [vmem:[%s2 + $0xb0] sm:$0xff] %vm189, 0.0
        %213 = vst.msk [vmem:[%s2 + $0xb8] sm:$0xff] %vm189, 0.0
        %214 = vst.msk [vmem:[%s2 + $0xc0] sm:$0xff] %vm189, 0.0
        %215 = vst.msk [vmem:[%s2 + $0xc8] sm:$0xff] %vm189, 0.0
        %216 = vst.msk [vmem:[%s2 + $0xd0] sm:$0xff] %vm189, 0.0
        %217 = vst.msk [vmem:[%s2 + $0xd8] sm:$0xff] %vm189, 0.0
        %218 = vst.msk [vmem:[%s2 + $0xe0] sm:$0xff] %vm189, 0.0
        %219 = vst.msk [vmem:[%s2 + $0xe8] sm:$0xff] %vm189, 0.0
        %220 = vst.msk [vmem:[%s2 + $0xf0] sm:$0xff] %vm189, 0.0
        %221 = vst.msk [vmem:[%s2 + $0xf8] sm:$0xff] %vm189, 0.0
        %222 = vst.msk [vmem:[%s3] sm:$0xff] %vm189, 0.0
        %223 = vst.msk [vmem:[%s3 + $0x8] sm:$0xff] %vm189, 0.0
        %224 = vst.msk [vmem:[%s3 + $0x10] sm:$0xff] %vm189, 0.0
        %225 = vst.msk [vmem:[%s3 + $0x18] sm:$0xff] %vm189, 0.0
        %226 = vst.msk [vmem:[%s3 + $0x20] sm:$0xff] %vm189, 0.0
        %227 = vst.msk [vmem:[%s3 + $0x28] sm:$0xff] %vm189, 0.0
        %228 = vst.msk [vmem:[%s3 + $0x30] sm:$0xff] %vm189, 0.0
        %229 = vst.msk [vmem:[%s3 + $0x38] sm:$0xff] %vm189, 0.0
        %230 = vst.msk [vmem:[%s3 + $0x40] sm:$0xff] %vm189, 0.0
        %231 = vst.msk [vmem:[%s3 + $0x48] sm:$0xff] %vm189, 0.0
        %232 = vst.msk [vmem:[%s3 + $0x50] sm:$0xff] %vm189, 0.0
        %233 = vst.msk [vmem:[%s3 + $0x58] sm:$0xff] %vm189, 0.0
        %234 = vst.msk [vmem:[%s3 + $0x60] sm:$0xff] %vm189, 0.0
        %235 = vst.msk [vmem:[%s3 + $0x68] sm:$0xff] %vm189, 0.0
        %236 = vst.msk [vmem:[%s3 + $0x70] sm:$0xff] %vm189, 0.0
        %237 = vst.msk [vmem:[%s3 + $0x78] sm:$0xff] %vm189, 0.0
        %238 = vst.msk [vmem:[%s3 + $0x80] sm:$0xff] %vm189, 0.0
        %239 = vst.msk [vmem:[%s3 + $0x88] sm:$0xff] %vm189, 0.0
        %240 = vst.msk [vmem:[%s3 + $0x90] sm:$0xff] %vm189, 0.0
        %241 = vst.msk [vmem:[%s3 + $0x98] sm:$0xff] %vm189, 0.0
        %242 = vst.msk [vmem:[%s3 + $0xa0] sm:$0xff] %vm189, 0.0
        %243 = vst.msk [vmem:[%s3 + $0xa8] sm:$0xff] %vm189, 0.0
        %244 = vst.msk [vmem:[%s3 + $0xb0] sm:$0xff] %vm189, 0.0
        %245 = vst.msk [vmem:[%s3 + $0xb8] sm:$0xff] %vm189, 0.0
        %246 = vst.msk [vmem:[%s3 + $0xc0] sm:$0xff] %vm189, 0.0
        %247 = vst.msk [vmem:[%s3 + $0xc8] sm:$0xff] %vm189, 0.0
        %248 = vst.msk [vmem:[%s3 + $0xd0] sm:$0xff] %vm189, 0.0
        %249 = vst.msk [vmem:[%s3 + $0xd8] sm:$0xff] %vm189, 0.0
        %250 = vst.msk [vmem:[%s3 + $0xe0] sm:$0xff] %vm189, 0.0
        %251 = vst.msk [vmem:[%s3 + $0xe8] sm:$0xff] %vm189, 0.0
        %252 = vst.msk [vmem:[%s3 + $0xf0] sm:$0xff] %vm189, 0.0
        %253 = vst.msk [vmem:[%s3 + $0xf8] sm:$0xff] %vm189, 0.0
      $region32: #{predictor_forward.2} parent=27 // pred_fallthru
        _
      %v254 = vld [vmem:[%s180] sm:$0xff]
      %v255 = vld [vmem:[%s180 + $0x8] sm:$0xff]
      %v256 = vld [vmem:[%s180 + $0x10] sm:$0xff]
      %v257 = vld [vmem:[%s180 + $0x18] sm:$0xff]
      %v258 = vld [vmem:[%s180 + $0x20] sm:$0xff]
      %v259 = vld [vmem:[%s180 + $0x28] sm:$0xff]
      %v260 = vld [vmem:[%s180 + $0x30] sm:$0xff]
      %v261 = vld [vmem:[%s180 + $0x38] sm:$0xff]
      %v262 = vpack.c.bf16 %v256, %v254
      %v263 = vpack.c.bf16 %v257, %v255
      %v264 = vpack.c.bf16 %v260, %v258
      %v265 = vpack.c.bf16 %v261, %v259
      %v266 = vld [vmem:[%s1] sm:$0xf]
      %v267 = vld [vmem:[%s1 + $0x4] sm:$0xf]
      %v268 = vld [vmem:[%s1 + $0x8] sm:$0xf]
      %v269 = vld [vmem:[%s1 + $0xc] sm:$0xf]
      %v270 = vld [vmem:[%s1 + $0x10] sm:$0xf]
      %v271 = vld [vmem:[%s1 + $0x14] sm:$0xf]
      %v272 = vld [vmem:[%s1 + $0x18] sm:$0xf]
      %v273 = vld [vmem:[%s1 + $0x1c] sm:$0xf]
      %v274 = vld [vmem:[%s1 + $0x20] sm:$0xf]
      %v275 = vld [vmem:[%s1 + $0x24] sm:$0xf]
      %v276 = vld [vmem:[%s1 + $0x28] sm:$0xf]
      %v277 = vld [vmem:[%s1 + $0x2c] sm:$0xf]
      %v278 = vld [vmem:[%s1 + $0x30] sm:$0xf]
      %v279 = vld [vmem:[%s1 + $0x34] sm:$0xf]
      %v280 = vld [vmem:[%s1 + $0x38] sm:$0xf]
      %v281 = vld [vmem:[%s1 + $0x3c] sm:$0xf]
      %v282 = vld [vmem:[%s1 + $0x40] sm:$0xf]
      %v283 = vld [vmem:[%s1 + $0x44] sm:$0xf]
      %v284 = vld [vmem:[%s1 + $0x48] sm:$0xf]
      %v285 = vld [vmem:[%s1 + $0x4c] sm:$0xf]
      %v286 = vld [vmem:[%s1 + $0x50] sm:$0xf]
      %v287 = vld [vmem:[%s1 + $0x54] sm:$0xf]
      %v288 = vld [vmem:[%s1 + $0x58] sm:$0xf]
      %v289 = vld [vmem:[%s1 + $0x5c] sm:$0xf]
      %v290 = vld [vmem:[%s1 + $0x60] sm:$0xf]
      %v291 = vld [vmem:[%s1 + $0x64] sm:$0xf]
      %v292 = vld [vmem:[%s1 + $0x68] sm:$0xf]
      %v293 = vld [vmem:[%s1 + $0x6c] sm:$0xf]
      %v294 = vld [vmem:[%s1 + $0x70] sm:$0xf]
      %v295 = vld [vmem:[%s1 + $0x74] sm:$0xf]
      %v296 = vld [vmem:[%s1 + $0x78] sm:$0xf]
      %v297 = vld [vmem:[%s1 + $0x7c] sm:$0xf]
      %v330 = vunpack.c.l.b16 %v266
      %v331 = vunpack.c.l.b16 %v267
      %v332 = vunpack.c.l.b16 %v268
      %v333 = vunpack.c.l.b16 %v269
      %v334 = vunpack.c.l.b16 %v270
      %v335 = vunpack.c.l.b16 %v271
      %v336 = vunpack.c.l.b16 %v272
      %v337 = vunpack.c.l.b16 %v273
      %v338 = vunpack.c.l.b16 %v274
      %v339 = vunpack.c.l.b16 %v275
      %v340 = vunpack.c.l.b16 %v276
      %v341 = vunpack.c.l.b16 %v277
      %v342 = vunpack.c.l.b16 %v278
      %v343 = vunpack.c.l.b16 %v279
      %v344 = vunpack.c.l.b16 %v280
      %v345 = vunpack.c.l.b16 %v281
      %v346 = vunpack.c.l.b16 %v282
      %v347 = vunpack.c.l.b16 %v283
      %v348 = vunpack.c.l.b16 %v284
      %v349 = vunpack.c.l.b16 %v285
      %v350 = vunpack.c.l.b16 %v286
      %v351 = vunpack.c.l.b16 %v287
      %v352 = vunpack.c.l.b16 %v288
      %v353 = vunpack.c.l.b16 %v289
      %v354 = vunpack.c.l.b16 %v290
      %v355 = vunpack.c.l.b16 %v291
      %v356 = vunpack.c.l.b16 %v292
      %v357 = vunpack.c.l.b16 %v293
      %v358 = vunpack.c.l.b16 %v294
      %v359 = vunpack.c.l.b16 %v295
      %v360 = vunpack.c.l.b16 %v296
      %v361 = vunpack.c.l.b16 %v297
      %v362 = vpack.c.b16 %v331, %v330
      %v363 = vpack.c.b16 %v333, %v332
      %v364 = vpack.c.b16 %v335, %v334
      %v365 = vpack.c.b16 %v337, %v336
      %v366 = vpack.c.b16 %v339, %v338
      %v367 = vpack.c.b16 %v341, %v340
      %v368 = vpack.c.b16 %v343, %v342
      %v369 = vpack.c.b16 %v345, %v344
      %v370 = vpack.c.b16 %v347, %v346
      %v371 = vpack.c.b16 %v349, %v348
      %v372 = vpack.c.b16 %v351, %v350
      %v373 = vpack.c.b16 %v353, %v352
      %v374 = vpack.c.b16 %v355, %v354
      %v375 = vpack.c.b16 %v357, %v356
      %v376 = vpack.c.b16 %v359, %v358
      %v377 = vpack.c.b16 %v361, %v360
      %vm378 = vcmask 261120
      %v380 = vsel %vm378, %v362, 0
      %v383 = vsel %vm378, %v363, 0
      %v386 = vsel %vm378, %v364, 0
      %v389 = vsel %vm378, %v365, 0
      %v392 = vsel %vm378, %v366, 0
      %v395 = vsel %vm378, %v367, 0
      %v398 = vsel %vm378, %v368, 0
      %v401 = vsel %vm378, %v369, 0
      %v404 = vsel %vm378, %v370, 0
      %v407 = vsel %vm378, %v371, 0
      %v410 = vsel %vm378, %v372, 0
      %v413 = vsel %vm378, %v373, 0
      %v416 = vsel %vm378, %v374, 0
      %v419 = vsel %vm378, %v375, 0
      %v422 = vsel %vm378, %v376, 0
      %v425 = vsel %vm378, %v377, 0
      %427 = vmatpush.bf16.msra.mxu0 0
      %428 = vmatpush.bf16.msra.mxu0 0
      %429 = vmatpush.bf16.msra.mxu0 0
      %430 = vmatpush.bf16.msra.mxu0 0
      %431 = vmatpush.bf16.msra.mxu0 0
      %432 = vmatpush.bf16.msra.mxu0 0
      %433 = vmatpush.bf16.msra.mxu0 %v264
      %434 = vmatpush.bf16.msra.mxu0 %v262
      %435 = vmatmul.bf16.gmra.mxu0 %v380
      %v436 = vpop.f32.mrf.mxu0
      %v437 = vadd.f32 0.0, %v436
      %v438 = vpop.f32.mrf.mxu0
      %v439 = vadd.f32 0.0, %v438
      %440 = vmatmul.bf16.gmra.mxu0 %v383
      %v441 = vpop.f32.mrf.mxu0
      %v442 = vadd.f32 0.0, %v441
      %v443 = vpop.f32.mrf.mxu0
      %v444 = vadd.f32 0.0, %v443
      %445 = vmatmul.bf16.gmra.mxu0 %v386
      %v446 = vpop.f32.mrf.mxu0
      %v447 = vadd.f32 0.0, %v446
      %v448 = vpop.f32.mrf.mxu0
      %v449 = vadd.f32 0.0, %v448
      %450 = vmatmul.bf16.gmra.mxu0 %v389
      %v451 = vpop.f32.mrf.mxu0
      %v452 = vadd.f32 0.0, %v451
      %v453 = vpop.f32.mrf.mxu0
      %v454 = vadd.f32 0.0, %v453
      %455 = vmatmul.bf16.gmra.mxu0 %v392
      %v456 = vpop.f32.mrf.mxu0
      %v457 = vadd.f32 0.0, %v456
      %v458 = vpop.f32.mrf.mxu0
      %v459 = vadd.f32 0.0, %v458
      %460 = vmatmul.bf16.gmra.mxu0 %v395
      %v461 = vpop.f32.mrf.mxu0
      %v462 = vadd.f32 0.0, %v461
      %v463 = vpop.f32.mrf.mxu0
      %v464 = vadd.f32 0.0, %v463
      %465 = vmatmul.bf16.gmra.mxu0 %v398
      %v466 = vpop.f32.mrf.mxu0
      %v467 = vadd.f32 0.0, %v466
      %v468 = vpop.f32.mrf.mxu0
      %v469 = vadd.f32 0.0, %v468
      %470 = vmatmul.bf16.gmra.mxu0 %v401
      %v471 = vpop.f32.mrf.mxu0
      %v472 = vadd.f32 0.0, %v471
      %v473 = vpop.f32.mrf.mxu0
      %v474 = vadd.f32 0.0, %v473
      %475 = vmatmul.bf16.gmra.mxu0 %v404
      %v476 = vpop.f32.mrf.mxu0
      %v477 = vadd.f32 0.0, %v476
      %v478 = vpop.f32.mrf.mxu0
      %v479 = vadd.f32 0.0, %v478
      %480 = vmatmul.bf16.gmra.mxu0 %v407
      %v481 = vpop.f32.mrf.mxu0
      %v482 = vadd.f32 0.0, %v481
      %v483 = vpop.f32.mrf.mxu0
      %v484 = vadd.f32 0.0, %v483
      %485 = vmatmul.bf16.gmra.mxu0 %v410
      %v486 = vpop.f32.mrf.mxu0
      %v487 = vadd.f32 0.0, %v486
      %v488 = vpop.f32.mrf.mxu0
      %v489 = vadd.f32 0.0, %v488
      %490 = vmatmul.bf16.gmra.mxu0 %v413
      %v491 = vpop.f32.mrf.mxu0
      %v492 = vadd.f32 0.0, %v491
      %v493 = vpop.f32.mrf.mxu0
      %v494 = vadd.f32 0.0, %v493
      %495 = vmatmul.bf16.gmra.mxu0 %v416
      %v496 = vpop.f32.mrf.mxu0
      %v497 = vadd.f32 0.0, %v496
      %v498 = vpop.f32.mrf.mxu0
      %v499 = vadd.f32 0.0, %v498
      %500 = vmatmul.bf16.gmra.mxu0 %v419
      %v501 = vpop.f32.mrf.mxu0
      %v502 = vadd.f32 0.0, %v501
      %v503 = vpop.f32.mrf.mxu0
      %v504 = vadd.f32 0.0, %v503
      %505 = vmatmul.bf16.gmra.mxu0 %v422
      %v506 = vpop.f32.mrf.mxu0
      %v507 = vadd.f32 0.0, %v506
      %v508 = vpop.f32.mrf.mxu0
      %v509 = vadd.f32 0.0, %v508
      %510 = vmatmul.bf16.gmra.mxu0 %v425
      %v511 = vpop.f32.mrf.mxu0
      %v512 = vadd.f32 0.0, %v511
      %v513 = vpop.f32.mrf.mxu0
      %v514 = vadd.f32 0.0, %v513
      %515 = vdwg.mxu0
      %516 = vmatpush.bf16.msra.mxu0 0
      %517 = vmatpush.bf16.msra.mxu0 0
      %518 = vmatpush.bf16.msra.mxu0 0
      %519 = vmatpush.bf16.msra.mxu0 0
      %520 = vmatpush.bf16.msra.mxu0 0
      %521 = vmatpush.bf16.msra.mxu0 0
      %522 = vmatpush.bf16.msra.mxu0 %v265
      %523 = vmatpush.bf16.msra.mxu0 %v263
      %524 = vmatmul.bf16.gmra.mxu0 %v380
      %v525 = vpop.f32.mrf.mxu0
      %v526 = vadd.f32 0.0, %v525
      %v527 = vpop.f32.mrf.mxu0
      %v528 = vadd.f32 0.0, %v527
      %529 = vmatmul.bf16.gmra.mxu0 %v383
      %v530 = vpop.f32.mrf.mxu0
      %v531 = vadd.f32 0.0, %v530
      %v532 = vpop.f32.mrf.mxu0
      %v533 = vadd.f32 0.0, %v532
      %534 = vmatmul.bf16.gmra.mxu0 %v386
      %v535 = vpop.f32.mrf.mxu0
      %v536 = vadd.f32 0.0, %v535
      %v537 = vpop.f32.mrf.mxu0
      %v538 = vadd.f32 0.0, %v537
      %539 = vmatmul.bf16.gmra.mxu0 %v389
      %v540 = vpop.f32.mrf.mxu0
      %v541 = vadd.f32 0.0, %v540
      %v542 = vpop.f32.mrf.mxu0
      %v543 = vadd.f32 0.0, %v542
      %544 = vmatmul.bf16.gmra.mxu0 %v392
      %v545 = vpop.f32.mrf.mxu0
      %v546 = vadd.f32 0.0, %v545
      %v547 = vpop.f32.mrf.mxu0
      %v548 = vadd.f32 0.0, %v547
      %549 = vmatmul.bf16.gmra.mxu0 %v395
      %v550 = vpop.f32.mrf.mxu0
      %v551 = vadd.f32 0.0, %v550
      %v552 = vpop.f32.mrf.mxu0
      %v553 = vadd.f32 0.0, %v552
      %554 = vmatmul.bf16.gmra.mxu0 %v398
      %v555 = vpop.f32.mrf.mxu0
      %v556 = vadd.f32 0.0, %v555
      %v557 = vpop.f32.mrf.mxu0
      %v558 = vadd.f32 0.0, %v557
      %559 = vmatmul.bf16.gmra.mxu0 %v401
      %v560 = vpop.f32.mrf.mxu0
      %v561 = vadd.f32 0.0, %v560
      %v562 = vpop.f32.mrf.mxu0
      %v563 = vadd.f32 0.0, %v562
      %564 = vmatmul.bf16.gmra.mxu0 %v404
      %v565 = vpop.f32.mrf.mxu0
      %v566 = vadd.f32 0.0, %v565
      %v567 = vpop.f32.mrf.mxu0
      %v568 = vadd.f32 0.0, %v567
      %569 = vmatmul.bf16.gmra.mxu0 %v407
      %v570 = vpop.f32.mrf.mxu0
      %v571 = vadd.f32 0.0, %v570
      %v572 = vpop.f32.mrf.mxu0
      %v573 = vadd.f32 0.0, %v572
      %574 = vmatmul.bf16.gmra.mxu0 %v410
      %v575 = vpop.f32.mrf.mxu0
      %v576 = vadd.f32 0.0, %v575
      %v577 = vpop.f32.mrf.mxu0
      %v578 = vadd.f32 0.0, %v577
      %579 = vmatmul.bf16.gmra.mxu0 %v413
      %v580 = vpop.f32.mrf.mxu0
      %v581 = vadd.f32 0.0, %v580
      %v582 = vpop.f32.mrf.mxu0
      %v583 = vadd.f32 0.0, %v582
      %584 = vmatmul.bf16.gmra.mxu0 %v416
      %v585 = vpop.f32.mrf.mxu0
      %v586 = vadd.f32 0.0, %v585
      %v587 = vpop.f32.mrf.mxu0
      %v588 = vadd.f32 0.0, %v587
      %589 = vmatmul.bf16.gmra.mxu0 %v419
      %v590 = vpop.f32.mrf.mxu0
      %v591 = vadd.f32 0.0, %v590
      %v592 = vpop.f32.mrf.mxu0
      %v593 = vadd.f32 0.0, %v592
      %594 = vmatmul.bf16.gmra.mxu0 %v422
      %v595 = vpop.f32.mrf.mxu0
      %v596 = vadd.f32 0.0, %v595
      %v597 = vpop.f32.mrf.mxu0
      %v598 = vadd.f32 0.0, %v597
      %599 = vmatmul.bf16.gmra.mxu0 %v425
      %v600 = vpop.f32.mrf.mxu0
      %v601 = vadd.f32 0.0, %v600
      %v602 = vpop.f32.mrf.mxu0
      %v603 = vadd.f32 0.0, %v602
      %604 = vdwg.mxu0
      %v605 = vld [vmem:[%s2] sm:$0xff]
      %v606 = vld [vmem:[%s2 + $0x8] sm:$0xff]
      %v607 = vld [vmem:[%s2 + $0x10] sm:$0xff]
      %v608 = vld [vmem:[%s2 + $0x18] sm:$0xff]
      %v609 = vld [vmem:[%s2 + $0x20] sm:$0xff]
      %v610 = vld [vmem:[%s2 + $0x28] sm:$0xff]
      %v611 = vld [vmem:[%s2 + $0x30] sm:$0xff]
      %v612 = vld [vmem:[%s2 + $0x38] sm:$0xff]
      %v613 = vld [vmem:[%s2 + $0x40] sm:$0xff]
      %v614 = vld [vmem:[%s2 + $0x48] sm:$0xff]
      %v615 = vld [vmem:[%s2 + $0x50] sm:$0xff]
      %v616 = vld [vmem:[%s2 + $0x58] sm:$0xff]
      %v617 = vld [vmem:[%s2 + $0x60] sm:$0xff]
      %v618 = vld [vmem:[%s2 + $0x68] sm:$0xff]
      %v619 = vld [vmem:[%s2 + $0x70] sm:$0xff]
      %v620 = vld [vmem:[%s2 + $0x78] sm:$0xff]
      %v621 = vld [vmem:[%s2 + $0x80] sm:$0xff]
      %v622 = vld [vmem:[%s2 + $0x88] sm:$0xff]
      %v623 = vld [vmem:[%s2 + $0x90] sm:$0xff]
      %v624 = vld [vmem:[%s2 + $0x98] sm:$0xff]
      %v625 = vld [vmem:[%s2 + $0xa0] sm:$0xff]
      %v626 = vld [vmem:[%s2 + $0xa8] sm:$0xff]
      %v627 = vld [vmem:[%s2 + $0xb0] sm:$0xff]
      %v628 = vld [vmem:[%s2 + $0xb8] sm:$0xff]
      %v629 = vld [vmem:[%s2 + $0xc0] sm:$0xff]
      %v630 = vld [vmem:[%s2 + $0xc8] sm:$0xff]
      %v631 = vld [vmem:[%s2 + $0xd0] sm:$0xff]
      %v632 = vld [vmem:[%s2 + $0xd8] sm:$0xff]
      %v633 = vld [vmem:[%s2 + $0xe0] sm:$0xff]
      %v634 = vld [vmem:[%s2 + $0xe8] sm:$0xff]
      %v635 = vld [vmem:[%s2 + $0xf0] sm:$0xff]
      %v636 = vld [vmem:[%s2 + $0xf8] sm:$0xff]
      %v637 = vadd.f32 %v437, %v526
      %638 = vadd.xlane.f32.xlu0 %v637
      %v639 = vpop.xlane.xlu0 %638
      %v640 = vadd.f32 %v439, %v528
      %641 = vadd.xlane.f32.xlu0 %v640
      %v642 = vpop.xlane.xlu0 %641
      %v643 = vadd.f32 %v442, %v531
      %644 = vadd.xlane.f32.xlu0 %v643
      %v645 = vpop.xlane.xlu0 %644
      %v646 = vadd.f32 %v444, %v533
      %647 = vadd.xlane.f32.xlu0 %v646
      %v648 = vpop.xlane.xlu0 %647
      %v649 = vadd.f32 %v447, %v536
      %650 = vadd.xlane.f32.xlu0 %v649
      %v651 = vpop.xlane.xlu0 %650
      %v652 = vadd.f32 %v449, %v538
      %653 = vadd.xlane.f32.xlu0 %v652
      %v654 = vpop.xlane.xlu0 %653
      %v655 = vadd.f32 %v452, %v541
      %656 = vadd.xlane.f32.xlu0 %v655
      %v657 = vpop.xlane.xlu0 %656
      %v658 = vadd.f32 %v454, %v543
      %659 = vadd.xlane.f32.xlu0 %v658
      %v660 = vpop.xlane.xlu0 %659
      %v661 = vadd.f32 %v457, %v546
      %662 = vadd.xlane.f32.xlu0 %v661
      %v663 = vpop.xlane.xlu0 %662
      %v664 = vadd.f32 %v459, %v548
      %665 = vadd.xlane.f32.xlu0 %v664
      %v666 = vpop.xlane.xlu0 %665
      %v667 = vadd.f32 %v462, %v551
      %668 = vadd.xlane.f32.xlu0 %v667
      %v669 = vpop.xlane.xlu0 %668
      %v670 = vadd.f32 %v464, %v553
      %671 = vadd.xlane.f32.xlu0 %v670
      %v672 = vpop.xlane.xlu0 %671
      %v673 = vadd.f32 %v467, %v556
      %674 = vadd.xlane.f32.xlu0 %v673
      %v675 = vpop.xlane.xlu0 %674
      %v676 = vadd.f32 %v469, %v558
      %677 = vadd.xlane.f32.xlu0 %v676
      %v678 = vpop.xlane.xlu0 %677
      %v679 = vadd.f32 %v472, %v561
      %680 = vadd.xlane.f32.xlu0 %v679
      %v681 = vpop.xlane.xlu0 %680
      %v682 = vadd.f32 %v474, %v563
      %683 = vadd.xlane.f32.xlu0 %v682
      %v684 = vpop.xlane.xlu0 %683
      %v685 = vadd.f32 %v477, %v566
      %686 = vadd.xlane.f32.xlu0 %v685
      %v687 = vpop.xlane.xlu0 %686
      %v688 = vadd.f32 %v479, %v568
      %689 = vadd.xlane.f32.xlu0 %v688
      %v690 = vpop.xlane.xlu0 %689
      %v691 = vadd.f32 %v482, %v571
      %692 = vadd.xlane.f32.xlu0 %v691
      %v693 = vpop.xlane.xlu0 %692
      %v694 = vadd.f32 %v484, %v573
      %695 = vadd.xlane.f32.xlu0 %v694
      %v696 = vpop.xlane.xlu0 %695
      %v697 = vadd.f32 %v487, %v576
      %698 = vadd.xlane.f32.xlu0 %v697
      %v699 = vpop.xlane.xlu0 %698
      %v700 = vadd.f32 %v489, %v578
      %701 = vadd.xlane.f32.xlu0 %v700
      %v702 = vpop.xlane.xlu0 %701
      %v703 = vadd.f32 %v492, %v581
      %704 = vadd.xlane.f32.xlu0 %v703
      %v705 = vpop.xlane.xlu0 %704
      %v706 = vadd.f32 %v494, %v583
      %707 = vadd.xlane.f32.xlu0 %v706
      %v708 = vpop.xlane.xlu0 %707
      %v709 = vadd.f32 %v497, %v586
      %710 = vadd.xlane.f32.xlu0 %v709
      %v711 = vpop.xlane.xlu0 %710
      %v712 = vadd.f32 %v499, %v588
      %713 = vadd.xlane.f32.xlu0 %v712
      %v714 = vpop.xlane.xlu0 %713
      %v715 = vadd.f32 %v502, %v591
      %716 = vadd.xlane.f32.xlu0 %v715
      %v717 = vpop.xlane.xlu0 %716
      %v718 = vadd.f32 %v504, %v593
      %719 = vadd.xlane.f32.xlu0 %v718
      %v720 = vpop.xlane.xlu0 %719
      %v721 = vadd.f32 %v507, %v596
      %722 = vadd.xlane.f32.xlu0 %v721
      %v723 = vpop.xlane.xlu0 %722
      %v724 = vadd.f32 %v509, %v598
      %725 = vadd.xlane.f32.xlu0 %v724
      %v726 = vpop.xlane.xlu0 %725
      %v727 = vadd.f32 %v512, %v601
      %728 = vadd.xlane.f32.xlu0 %v727
      %v729 = vpop.xlane.xlu0 %728
      %v730 = vadd.f32 %v514, %v603
      %731 = vadd.xlane.f32.xlu0 %v730
      %v732 = vpop.xlane.xlu0 %731
      %v733 = vadd.f32 %v605, %v639
      %v734 = vadd.f32 %v606, %v642
      %v735 = vadd.f32 %v607, %v645
      %v736 = vadd.f32 %v608, %v648
      %v737 = vadd.f32 %v609, %v651
      %v738 = vadd.f32 %v610, %v654
      %v739 = vadd.f32 %v611, %v657
      %v740 = vadd.f32 %v612, %v660
      %v741 = vadd.f32 %v613, %v663
      %v742 = vadd.f32 %v614, %v666
      %v743 = vadd.f32 %v615, %v669
      %v744 = vadd.f32 %v616, %v672
      %v745 = vadd.f32 %v617, %v675
      %v746 = vadd.f32 %v618, %v678
      %v747 = vadd.f32 %v619, %v681
      %v748 = vadd.f32 %v620, %v684
      %v749 = vadd.f32 %v621, %v687
      %v750 = vadd.f32 %v622, %v690
      %v751 = vadd.f32 %v623, %v693
      %v752 = vadd.f32 %v624, %v696
      %v753 = vadd.f32 %v625, %v699
      %v754 = vadd.f32 %v626, %v702
      %v755 = vadd.f32 %v627, %v705
      %v756 = vadd.f32 %v628, %v708
      %v757 = vadd.f32 %v629, %v711
      %v758 = vadd.f32 %v630, %v714
      %v759 = vadd.f32 %v631, %v717
      %v760 = vadd.f32 %v632, %v720
      %v761 = vadd.f32 %v633, %v723
      %v762 = vadd.f32 %v634, %v726
      %v763 = vadd.f32 %v635, %v729
      %v764 = vadd.f32 %v636, %v732
      %vm765 = vcmask 7168
      %766 = vst.msk [vmem:[%s2] sm:$0xff] %vm765, %v733
      %767 = vst.msk [vmem:[%s2 + $0x8] sm:$0xff] %vm765, %v734
      %768 = vst.msk [vmem:[%s2 + $0x10] sm:$0xff] %vm765, %v735
      %769 = vst.msk [vmem:[%s2 + $0x18] sm:$0xff] %vm765, %v736
      %770 = vst.msk [vmem:[%s2 + $0x20] sm:$0xff] %vm765, %v737
      %771 = vst.msk [vmem:[%s2 + $0x28] sm:$0xff] %vm765, %v738
      %772 = vst.msk [vmem:[%s2 + $0x30] sm:$0xff] %vm765, %v739
      %773 = vst.msk [vmem:[%s2 + $0x38] sm:$0xff] %vm765, %v740
      %774 = vst.msk [vmem:[%s2 + $0x40] sm:$0xff] %vm765, %v741
      %775 = vst.msk [vmem:[%s2 + $0x48] sm:$0xff] %vm765, %v742
      %776 = vst.msk [vmem:[%s2 + $0x50] sm:$0xff] %vm765, %v743
      %777 = vst.msk [vmem:[%s2 + $0x58] sm:$0xff] %vm765, %v744
      %778 = vst.msk [vmem:[%s2 + $0x60] sm:$0xff] %vm765, %v745
      %779 = vst.msk [vmem:[%s2 + $0x68] sm:$0xff] %vm765, %v746
      %780 = vst.msk [vmem:[%s2 + $0x70] sm:$0xff] %vm765, %v747
      %781 = vst.msk [vmem:[%s2 + $0x78] sm:$0xff] %vm765, %v748
      %782 = vst.msk [vmem:[%s2 + $0x80] sm:$0xff] %vm765, %v749
      %783 = vst.msk [vmem:[%s2 + $0x88] sm:$0xff] %vm765, %v750
      %784 = vst.msk [vmem:[%s2 + $0x90] sm:$0xff] %vm765, %v751
      %785 = vst.msk [vmem:[%s2 + $0x98] sm:$0xff] %vm765, %v752
      %786 = vst.msk [vmem:[%s2 + $0xa0] sm:$0xff] %vm765, %v753
      %787 = vst.msk [vmem:[%s2 + $0xa8] sm:$0xff] %vm765, %v754
      %788 = vst.msk [vmem:[%s2 + $0xb0] sm:$0xff] %vm765, %v755
      %789 = vst.msk [vmem:[%s2 + $0xb8] sm:$0xff] %vm765, %v756
      %790 = vst.msk [vmem:[%s2 + $0xc0] sm:$0xff] %vm765, %v757
      %791 = vst.msk [vmem:[%s2 + $0xc8] sm:$0xff] %vm765, %v758
      %792 = vst.msk [vmem:[%s2 + $0xd0] sm:$0xff] %vm765, %v759
      %793 = vst.msk [vmem:[%s2 + $0xd8] sm:$0xff] %vm765, %v760
      %794 = vst.msk [vmem:[%s2 + $0xe0] sm:$0xff] %vm765, %v761
      %795 = vst.msk [vmem:[%s2 + $0xe8] sm:$0xff] %vm765, %v762
      %796 = vst.msk [vmem:[%s2 + $0xf0] sm:$0xff] %vm765, %v763
      %797 = vst.msk [vmem:[%s2 + $0xf8] sm:$0xff] %vm765, %v764
      %v798 = vld [vmem:[%s3] sm:$0xff]
      %v799 = vld [vmem:[%s3 + $0x8] sm:$0xff]
      %v800 = vld [vmem:[%s3 + $0x10] sm:$0xff]
      %v801 = vld [vmem:[%s3 + $0x18] sm:$0xff]
      %v802 = vld [vmem:[%s3 + $0x20] sm:$0xff]
      %v803 = vld [vmem:[%s3 + $0x28] sm:$0xff]
      %v804 = vld [vmem:[%s3 + $0x30] sm:$0xff]
      %v805 = vld [vmem:[%s3 + $0x38] sm:$0xff]
      %v806 = vld [vmem:[%s3 + $0x40] sm:$0xff]
      %v807 = vld [vmem:[%s3 + $0x48] sm:$0xff]
      %v808 = vld [vmem:[%s3 + $0x50] sm:$0xff]
      %v809 = vld [vmem:[%s3 + $0x58] sm:$0xff]
      %v810 = vld [vmem:[%s3 + $0x60] sm:$0xff]
      %v811 = vld [vmem:[%s3 + $0x68] sm:$0xff]
      %v812 = vld [vmem:[%s3 + $0x70] sm:$0xff]
      %v813 = vld [vmem:[%s3 + $0x78] sm:$0xff]
      %v814 = vld [vmem:[%s3 + $0x80] sm:$0xff]
      %v815 = vld [vmem:[%s3 + $0x88] sm:$0xff]
      %v816 = vld [vmem:[%s3 + $0x90] sm:$0xff]
      %v817 = vld [vmem:[%s3 + $0x98] sm:$0xff]
      %v818 = vld [vmem:[%s3 + $0xa0] sm:$0xff]
      %v819 = vld [vmem:[%s3 + $0xa8] sm:$0xff]
      %v820 = vld [vmem:[%s3 + $0xb0] sm:$0xff]
      %v821 = vld [vmem:[%s3 + $0xb8] sm:$0xff]
      %v822 = vld [vmem:[%s3 + $0xc0] sm:$0xff]
      %v823 = vld [vmem:[%s3 + $0xc8] sm:$0xff]
      %v824 = vld [vmem:[%s3 + $0xd0] sm:$0xff]
      %v825 = vld [vmem:[%s3 + $0xd8] sm:$0xff]
      %v826 = vld [vmem:[%s3 + $0xe0] sm:$0xff]
      %v827 = vld [vmem:[%s3 + $0xe8] sm:$0xff]
      %v828 = vld [vmem:[%s3 + $0xf0] sm:$0xff]
      %v829 = vld [vmem:[%s3 + $0xf8] sm:$0xff]
      %v830 = vmul.f32 %v437, %v437
      %v831 = vmul.f32 %v526, %v526
      %v832 = vmul.f32 %v439, %v439
      %v833 = vmul.f32 %v528, %v528
      %v834 = vmul.f32 %v442, %v442
      %v835 = vmul.f32 %v531, %v531
      %v836 = vmul.f32 %v444, %v444
      %v837 = vmul.f32 %v533, %v533
      %v838 = vmul.f32 %v447, %v447
      %v839 = vmul.f32 %v536, %v536
      %v840 = vmul.f32 %v449, %v449
      %v841 = vmul.f32 %v538, %v538
      %v842 = vmul.f32 %v452, %v452
      %v843 = vmul.f32 %v541, %v541
      %v844 = vmul.f32 %v454, %v454
      %v845 = vmul.f32 %v543, %v543
      %v846 = vmul.f32 %v457, %v457
      %v847 = vmul.f32 %v546, %v546
      %v848 = vmul.f32 %v459, %v459
      %v849 = vmul.f32 %v548, %v548
      %v850 = vmul.f32 %v462, %v462
      %v851 = vmul.f32 %v551, %v551
      %v852 = vmul.f32 %v464, %v464
      %v853 = vmul.f32 %v553, %v553
      %v854 = vmul.f32 %v467, %v467
      %v855 = vmul.f32 %v556, %v556
      %v856 = vmul.f32 %v469, %v469
      %v857 = vmul.f32 %v558, %v558
      %v858 = vmul.f32 %v472, %v472
      %v859 = vmul.f32 %v561, %v561
      %v860 = vmul.f32 %v474, %v474
      %v861 = vmul.f32 %v563, %v563
      %v862 = vmul.f32 %v477, %v477
      %v863 = vmul.f32 %v566, %v566
      %v864 = vmul.f32 %v479, %v479
      %v865 = vmul.f32 %v568, %v568
      %v866 = vmul.f32 %v482, %v482
      %v867 = vmul.f32 %v571, %v571
      %v868 = vmul.f32 %v484, %v484
      %v869 = vmul.f32 %v573, %v573
      %v870 = vmul.f32 %v487, %v487
      %v871 = vmul.f32 %v576, %v576
      %v872 = vmul.f32 %v489, %v489
      %v873 = vmul.f32 %v578, %v578
      %v874 = vmul.f32 %v492, %v492
      %v875 = vmul.f32 %v581, %v581
      %v876 = vmul.f32 %v494, %v494
      %v877 = vmul.f32 %v583, %v583
      %v878 = vmul.f32 %v497, %v497
      %v879 = vmul.f32 %v586, %v586
      %v880 = vmul.f32 %v499, %v499
      %v881 = vmul.f32 %v588, %v588
      %v882 = vmul.f32 %v502, %v502
      %v883 = vmul.f32 %v591, %v591
      %v884 = vmul.f32 %v504, %v504
      %v885 = vmul.f32 %v593, %v593
      %v886 = vmul.f32 %v507, %v507
      %v887 = vmul.f32 %v596, %v596
      %v888 = vmul.f32 %v509, %v509
      %v889 = vmul.f32 %v598, %v598
      %v890 = vmul.f32 %v512, %v512
      %v891 = vmul.f32 %v601, %v601
      %v892 = vmul.f32 %v514, %v514
      %v893 = vmul.f32 %v603, %v603
      %v894 = vadd.f32 %v830, %v831
      %895 = vadd.xlane.f32.xlu0 %v894
      %v896 = vpop.xlane.xlu0 %895
      %v897 = vadd.f32 %v832, %v833
      %898 = vadd.xlane.f32.xlu0 %v897
      %v899 = vpop.xlane.xlu0 %898
      %v900 = vadd.f32 %v834, %v835
      %901 = vadd.xlane.f32.xlu0 %v900
      %v902 = vpop.xlane.xlu0 %901
      %v903 = vadd.f32 %v836, %v837
      %904 = vadd.xlane.f32.xlu0 %v903
      %v905 = vpop.xlane.xlu0 %904
      %v906 = vadd.f32 %v838, %v839
      %907 = vadd.xlane.f32.xlu0 %v906
      %v908 = vpop.xlane.xlu0 %907
      %v909 = vadd.f32 %v840, %v841
      %910 = vadd.xlane.f32.xlu0 %v909
      %v911 = vpop.xlane.xlu0 %910
      %v912 = vadd.f32 %v842, %v843
      %913 = vadd.xlane.f32.xlu0 %v912
      %v914 = vpop.xlane.xlu0 %913
      %v915 = vadd.f32 %v844, %v845
      %916 = vadd.xlane.f32.xlu0 %v915
      %v917 = vpop.xlane.xlu0 %916
      %v918 = vadd.f32 %v846, %v847
      %919 = vadd.xlane.f32.xlu0 %v918
      %v920 = vpop.xlane.xlu0 %919
      %v921 = vadd.f32 %v848, %v849
      %922 = vadd.xlane.f32.xlu0 %v921
      %v923 = vpop.xlane.xlu0 %922
      %v924 = vadd.f32 %v850, %v851
      %925 = vadd.xlane.f32.xlu0 %v924
      %v926 = vpop.xlane.xlu0 %925
      %v927 = vadd.f32 %v852, %v853
      %928 = vadd.xlane.f32.xlu0 %v927
      %v929 = vpop.xlane.xlu0 %928
      %v930 = vadd.f32 %v854, %v855
      %931 = vadd.xlane.f32.xlu0 %v930
      %v932 = vpop.xlane.xlu0 %931
      %v933 = vadd.f32 %v856, %v857
      %934 = vadd.xlane.f32.xlu0 %v933
      %v935 = vpop.xlane.xlu0 %934
      %v936 = vadd.f32 %v858, %v859
      %937 = vadd.xlane.f32.xlu0 %v936
      %v938 = vpop.xlane.xlu0 %937
      %v939 = vadd.f32 %v860, %v861
      %940 = vadd.xlane.f32.xlu0 %v939
      %v941 = vpop.xlane.xlu0 %940
      %v942 = vadd.f32 %v862, %v863
      %943 = vadd.xlane.f32.xlu0 %v942
      %v944 = vpop.xlane.xlu0 %943
      %v945 = vadd.f32 %v864, %v865
      %946 = vadd.xlane.f32.xlu0 %v945
      %v947 = vpop.xlane.xlu0 %946
      %v948 = vadd.f32 %v866, %v867
      %949 = vadd.xlane.f32.xlu0 %v948
      %v950 = vpop.xlane.xlu0 %949
      %v951 = vadd.f32 %v868, %v869
      %952 = vadd.xlane.f32.xlu0 %v951
      %v953 = vpop.xlane.xlu0 %952
      %v954 = vadd.f32 %v870, %v871
      %955 = vadd.xlane.f32.xlu0 %v954
      %v956 = vpop.xlane.xlu0 %955
      %v957 = vadd.f32 %v872, %v873
      %958 = vadd.xlane.f32.xlu0 %v957
      %v959 = vpop.xlane.xlu0 %958
      %v960 = vadd.f32 %v874, %v875
      %961 = vadd.xlane.f32.xlu0 %v960
      %v962 = vpop.xlane.xlu0 %961
      %v963 = vadd.f32 %v876, %v877
      %964 = vadd.xlane.f32.xlu0 %v963
      %v965 = vpop.xlane.xlu0 %964
      %v966 = vadd.f32 %v878, %v879
      %967 = vadd.xlane.f32.xlu0 %v966
      %v968 = vpop.xlane.xlu0 %967
      %v969 = vadd.f32 %v880, %v881
      %970 = vadd.xlane.f32.xlu0 %v969
      %v971 = vpop.xlane.xlu0 %970
      %v972 = vadd.f32 %v882, %v883
      %973 = vadd.xlane.f32.xlu0 %v972
      %v974 = vpop.xlane.xlu0 %973
      %v975 = vadd.f32 %v884, %v885
      %976 = vadd.xlane.f32.xlu0 %v975
      %v977 = vpop.xlane.xlu0 %976
      %v978 = vadd.f32 %v886, %v887
      %979 = vadd.xlane.f32.xlu0 %v978
      %v980 = vpop.xlane.xlu0 %979
      %v981 = vadd.f32 %v888, %v889
      %982 = vadd.xlane.f32.xlu0 %v981
      %v983 = vpop.xlane.xlu0 %982
      %v984 = vadd.f32 %v890, %v891
      %985 = vadd.xlane.f32.xlu0 %v984
      %v986 = vpop.xlane.xlu0 %985
      %v987 = vadd.f32 %v892, %v893
      %988 = vadd.xlane.f32.xlu0 %v987
      %v989 = vpop.xlane.xlu0 %988
      %v990 = vadd.f32 %v798, %v896
      %v991 = vadd.f32 %v799, %v899
      %v992 = vadd.f32 %v800, %v902
      %v993 = vadd.f32 %v801, %v905
      %v994 = vadd.f32 %v802, %v908
      %v995 = vadd.f32 %v803, %v911
      %v996 = vadd.f32 %v804, %v914
      %v997 = vadd.f32 %v805, %v917
      %v998 = vadd.f32 %v806, %v920
      %v999 = vadd.f32 %v807, %v923
      %v1000 = vadd.f32 %v808, %v926
      %v1001 = vadd.f32 %v809, %v929
      %v1002 = vadd.f32 %v810, %v932
      %v1003 = vadd.f32 %v811, %v935
      %v1004 = vadd.f32 %v812, %v938
      %v1005 = vadd.f32 %v813, %v941
      %v1006 = vadd.f32 %v814, %v944
      %v1007 = vadd.f32 %v815, %v947
      %v1008 = vadd.f32 %v816, %v950
      %v1009 = vadd.f32 %v817, %v953
      %v1010 = vadd.f32 %v818, %v956
      %v1011 = vadd.f32 %v819, %v959
      %v1012 = vadd.f32 %v820, %v962
      %v1013 = vadd.f32 %v821, %v965
      %v1014 = vadd.f32 %v822, %v968
      %v1015 = vadd.f32 %v823, %v971
      %v1016 = vadd.f32 %v824, %v974
      %v1017 = vadd.f32 %v825, %v977
      %v1018 = vadd.f32 %v826, %v980
      %v1019 = vadd.f32 %v827, %v983
      %v1020 = vadd.f32 %v828, %v986
      %v1021 = vadd.f32 %v829, %v989
      %1022 = vst.msk [vmem:[%s3] sm:$0xff] %vm765, %v990
      %1023 = vst.msk [vmem:[%s3 + $0x8] sm:$0xff] %vm765, %v991
      %1024 = vst.msk [vmem:[%s3 + $0x10] sm:$0xff] %vm765, %v992
      %1025 = vst.msk [vmem:[%s3 + $0x18] sm:$0xff] %vm765, %v993
      %1026 = vst.msk [vmem:[%s3 + $0x20] sm:$0xff] %vm765, %v994
      %1027 = vst.msk [vmem:[%s3 + $0x28] sm:$0xff] %vm765, %v995
      %1028 = vst.msk [vmem:[%s3 + $0x30] sm:$0xff] %vm765, %v996
      %1029 = vst.msk [vmem:[%s3 + $0x38] sm:$0xff] %vm765, %v997
      %1030 = vst.msk [vmem:[%s3 + $0x40] sm:$0xff] %vm765, %v998
      %1031 = vst.msk [vmem:[%s3 + $0x48] sm:$0xff] %vm765, %v999
      %1032 = vst.msk [vmem:[%s3 + $0x50] sm:$0xff] %vm765, %v1000
      %1033 = vst.msk [vmem:[%s3 + $0x58] sm:$0xff] %vm765, %v1001
      %1034 = vst.msk [vmem:[%s3 + $0x60] sm:$0xff] %vm765, %v1002
      %1035 = vst.msk [vmem:[%s3 + $0x68] sm:$0xff] %vm765, %v1003
      %1036 = vst.msk [vmem:[%s3 + $0x70] sm:$0xff] %vm765, %v1004
      %1037 = vst.msk [vmem:[%s3 + $0x78] sm:$0xff] %vm765, %v1005
      %1038 = vst.msk [vmem:[%s3 + $0x80] sm:$0xff] %vm765, %v1006
      %1039 = vst.msk [vmem:[%s3 + $0x88] sm:$0xff] %vm765, %v1007
      %1040 = vst.msk [vmem:[%s3 + $0x90] sm:$0xff] %vm765, %v1008
      %1041 = vst.msk [vmem:[%s3 + $0x98] sm:$0xff] %vm765, %v1009
      %1042 = vst.msk [vmem:[%s3 + $0xa0] sm:$0xff] %vm765, %v1010
      %1043 = vst.msk [vmem:[%s3 + $0xa8] sm:$0xff] %vm765, %v1011
      %1044 = vst.msk [vmem:[%s3 + $0xb0] sm:$0xff] %vm765, %v1012
      %1045 = vst.msk [vmem:[%s3 + $0xb8] sm:$0xff] %vm765, %v1013
      %1046 = vst.msk [vmem:[%s3 + $0xc0] sm:$0xff] %vm765, %v1014
      %1047 = vst.msk [vmem:[%s3 + $0xc8] sm:$0xff] %vm765, %v1015
      %1048 = vst.msk [vmem:[%s3 + $0xd0] sm:$0xff] %vm765, %v1016
      %1049 = vst.msk [vmem:[%s3 + $0xd8] sm:$0xff] %vm765, %v1017
      %1050 = vst.msk [vmem:[%s3 + $0xe0] sm:$0xff] %vm765, %v1018
      %1051 = vst.msk [vmem:[%s3 + $0xe8] sm:$0xff] %vm765, %v1019
      %1052 = vst.msk [vmem:[%s3 + $0xf0] sm:$0xff] %vm765, %v1020
      %1053 = vst.msk [vmem:[%s3 + $0xf8] sm:$0xff] %vm765, %v1021
      // Predicated region
      $region33: #{predictor_forward.2} parent=27 // pred_check
        %p1054 = pneg %p89
      $region34: #{predictor_forward.2} parent=27 // pred_check_branch
        %1056 = sbr.rel (%p1054) target = $region36
      $region35: #{predictor_forward.2} parent=27 // pred_region
        _
      $region36: #{predictor_forward.2} parent=27 // pred_fallthru
        _
      // Predicated region
      $region37: #{predictor_forward.2} parent=27 // pred_check
        %p1057 = pneg %p110
      $region38: #{predictor_forward.2} parent=27 // pred_check_branch
        %1059 = sbr.rel (%p1057) target = $region40
      $region39: #{predictor_forward.2} parent=27 // pred_region
        _
      $region40: #{predictor_forward.2} parent=27 // pred_fallthru
        _
      // Predicated region
      $region41: #{predictor_forward.2} parent=27 // pred_check
        %p1060 = pneg %p89
      $region42: #{predictor_forward.2} parent=27 // pred_check_branch
        %1062 = sbr.rel (%p1060) target = $region44
      $region43: #{predictor_forward.2} parent=27 // pred_region
        _
      $region44: #{predictor_forward.2} parent=27 // pred_fallthru
        _
      // Predicated region
      $region45: #{predictor_forward.2} parent=27 // pred_check
        %p1063 = pneg %p110
      $region46: #{predictor_forward.2} parent=27 // pred_check_branch
        %1065 = sbr.rel (%p1063) target = $region48
      $region47: #{predictor_forward.2} parent=27 // pred_region
        _
      $region48: #{predictor_forward.2} parent=27 // pred_fallthru
        _
    $region28: #{predictor_forward.2} parent=5 // pred_fallthru
      _
    %p1066 = scmp.le.s32.totalorder 2, %s10
    // Predicated region
    $region49: #{predictor_forward.2} parent=5 // pred_check
      %p1067 = pneg %p1066
    $region50: #{predictor_forward.2} parent=5 // pred_check_branch
      %1069 = sbr.rel (%p1067) target = $region52
    $region51: #{predictor_forward.2} parent=5 // pred_region
      %s1070 = ssub.s32 %s10, 2
    $region52: #{predictor_forward.2} parent=5 // pred_fallthru
      _
  $region6: #{predictor_forward.2} parent=0 // loop_footer
    %s14 = sadd.s32 1, %s10
  $region7: #{predictor_forward.2} parent=0 // loop_footer_branch
    %9 = sbr.rel target = $region3
  $region8: #{predictor_forward.2} parent=0 // loop_exit
    _

// kernel: predictor_forward.3
$region0: #{predictor_forward.3}
  #allocation0 [shape = 'u32[]', space=smem, size = 0x4, offset = 0x4, fixed_abs, tag = 'smem constant byte address 0x4 - core index']
  #allocation1 [shape = 'u32[72,128]{1,0:T(1,128)}', space=vmem, size = 0x9000, scoped, tag = 'internal scratch']
  %s0 = inlined_call_operand.vmem [shape: f32[2,32,256], index: 0, kind: input, shape index: {}]
  %s1 = inlined_call_operand.vmem [shape: bf16[256,32], index: 1, kind: input, shape index: {}]
  %s2 = inlined_call_operand.vmem [shape: bf16[32,256], index: 2, kind: input, shape index: {}]
  %s3 = inlined_call_operand.vmem [shape: f32[256,1], index: 3, kind: input, shape index: {}]
  %s4 = inlined_call_operand.vmem [shape: f32[256,1], index: 4, kind: input, shape index: {}]
  %s5 = inlined_call_operand.vmem [shape: f32[2,32,256], index: 5, kind: output, shape index: {}]
  %s6 = sld [smem:[#allocation0]]
  $region53: #{predictor_forward.3} parent=0
    _
  %s8 = ssub.s32 1, %s6
  %s9 = scalar_select 0, %s8, %s6
  loop: start=0, step=1, limit=4
  $region2: #{predictor_forward.3} parent=0 // loop_pre_header
    _
  $region3: #{predictor_forward.3} parent=0 // loop_header
    %s11 = sphi 0, %s15
    %p12 = scmp.ge.s32.totalorder %s11, 4
    %s18 = sphi 0, %s30
    %s19 = sphi 0, %s26
    %s20 = sphi 0, %s18
    %s21 = sphi 0, %s19
    %s22 = sphi 0, %s20
    %s23 = sphi 0, %s21
    %s35 = sphi 0, %s37
    %s38 = sphi 0, %s35
    %s39 = sphi 0, %s38
    %s55 = sphi 0, %s39
    %s59 = sphi 0, %s59
    %s61 = sphi 0, %s59
    %s62 = sphi 0, %s61
    %s76 = sphi 0, %s62
    %s80 = sphi 0, %s80
    %s82 = sphi 0, %s80
    %s83 = sphi 0, %s82
    %s97 = sphi 0, %s83
    %s101 = sphi 0, %s101
    %s103 = sphi 0, %s101
    %s104 = sphi 0, %s103
    %s118 = sphi 0, %s104
    %s122 = sphi 0, %s122
    %s124 = sphi 0, %s122
    %s125 = sphi 0, %s124
    %s139 = sphi 0, %s125
    %s147 = sphi 0, %s149
    %s150 = sphi 0, %s147
    %s151 = sphi 0, %s150
    %s167 = sphi 0, %s151
  $region4: #{predictor_forward.3} parent=0 // loop_header_branch
    %14 = sbr.rel (%p12) target = $region8
  $region5: #{predictor_forward.3} parent=0 // loop_body
    %s16 = ssub.s32 %s11, 1
    %s17 = ssub.s32 %s11, 2
    %s24 = sadd.s32 1, %s19
    %p25 = scmp.ge.s32.totalorder %s24, 1
    %s26 = scalar_select %p25, 0, %s24
    %s27 = sadd.s32 1, %s18
    %s28 = scalar_select %p25, %s27, %s18
    %p29 = scmp.ge.s32.totalorder %s28, 2
    %s30 = scalar_select %p29, 0, %s28
    %s31 = ssub.s32 %s18, %s30
    %s32 = ssub.s32 %s19, %s26
    %s33 = sor.u32 %s31, %s32
    %p34 = scmp.eq.s32.totalorder %s33, 0
    %s36 = sadd.s32 %s35, 1
    %s37 = scalar_select %p34, %s35, %s36
    %p40 = pneg %p34
    %p41 = scmp.eq.s32.totalorder %s11, 1
    %p42 = por %p40, %p41
    %p43 = scmp.ne.s32.totalorder %s35, %s38
    %p44 = scmp.eq.s32.totalorder %s11, 0
    %p45 = por %p43, %p44
    %p46 = scmp.ne.s32.totalorder %s35, %s38
    %p47 = scmp.eq.s32.totalorder %s16, 1
    %p48 = por %p46, %p47
    %p49 = scmp.ne.s32.totalorder %s38, %s39
    %p50 = scmp.eq.s32.totalorder %s16, 0
    %p51 = por %p49, %p50
    %p52 = scmp.ne.s32.totalorder %s38, %s39
    %p53 = scmp.eq.s32.totalorder %s17, 1
    %p54 = por %p52, %p53
    %p56 = scmp.ne.s32.totalorder %s39, %s55
    %p57 = scmp.eq.s32.totalorder %s17, 0
    %p58 = por %p56, %p57
    %s60 = sadd.s32 %s59, 1
    %p63 = scmp.eq.s32.totalorder %s11, 1
    %p64 = scmp.ne.s32.totalorder %s59, %s61
    %p65 = scmp.eq.s32.totalorder %s11, 0
    %p66 = por %p64, %p65
    %p67 = scmp.ne.s32.totalorder %s59, %s61
    %p68 = scmp.eq.s32.totalorder %s16, 1
    %p69 = por %p67, %p68
    %p70 = scmp.ne.s32.totalorder %s61, %s62
    %p71 = scmp.eq.s32.totalorder %s16, 0
    %p72 = por %p70, %p71
    %p73 = scmp.ne.s32.totalorder %s61, %s62
    %p74 = scmp.eq.s32.totalorder %s17, 1
    %p75 = por %p73, %p74
    %p77 = scmp.ne.s32.totalorder %s62, %s76
    %p78 = scmp.eq.s32.totalorder %s17, 0
    %p79 = por %p77, %p78
    %s81 = sadd.s32 %s80, 1
    %p84 = scmp.eq.s32.totalorder %s11, 1
    %p85 = scmp.ne.s32.totalorder %s80, %s82
    %p86 = scmp.eq.s32.totalorder %s11, 0
    %p87 = por %p85, %p86
    %p88 = scmp.ne.s32.totalorder %s80, %s82
    %p89 = scmp.eq.s32.totalorder %s16, 1
    %p90 = por %p88, %p89
    %p91 = scmp.ne.s32.totalorder %s82, %s83
    %p92 = scmp.eq.s32.totalorder %s16, 0
    %p93 = por %p91, %p92
    %p94 = scmp.ne.s32.totalorder %s82, %s83
    %p95 = scmp.eq.s32.totalorder %s17, 1
    %p96 = por %p94, %p95
    %p98 = scmp.ne.s32.totalorder %s83, %s97
    %p99 = scmp.eq.s32.totalorder %s17, 0
    %p100 = por %p98, %p99
    %s102 = sadd.s32 %s101, 1
    %p105 = scmp.eq.s32.totalorder %s11, 1
    %p106 = scmp.ne.s32.totalorder %s101, %s103
    %p107 = scmp.eq.s32.totalorder %s11, 0
    %p108 = por %p106, %p107
    %p109 = scmp.ne.s32.totalorder %s101, %s103
    %p110 = scmp.eq.s32.totalorder %s16, 1
    %p111 = por %p109, %p110
    %p112 = scmp.ne.s32.totalorder %s103, %s104
    %p113 = scmp.eq.s32.totalorder %s16, 0
    %p114 = por %p112, %p113
    %p115 = scmp.ne.s32.totalorder %s103, %s104
    %p116 = scmp.eq.s32.totalorder %s17, 1
    %p117 = por %p115, %p116
    %p119 = scmp.ne.s32.totalorder %s104, %s118
    %p120 = scmp.eq.s32.totalorder %s17, 0
    %p121 = por %p119, %p120
    %s123 = sadd.s32 %s122, 1
    %p126 = scmp.eq.s32.totalorder %s11, 1
    %p127 = scmp.ne.s32.totalorder %s122, %s124
    %p128 = scmp.eq.s32.totalorder %s11, 0
    %p129 = por %p127, %p128
    %p130 = scmp.ne.s32.totalorder %s122, %s124
    %p131 = scmp.eq.s32.totalorder %s16, 1
    %p132 = por %p130, %p131
    %p133 = scmp.ne.s32.totalorder %s124, %s125
    %p134 = scmp.eq.s32.totalorder %s16, 0
    %p135 = por %p133, %p134
    %p136 = scmp.ne.s32.totalorder %s124, %s125
    %p137 = scmp.eq.s32.totalorder %s17, 1
    %p138 = por %p136, %p137
    %p140 = scmp.ne.s32.totalorder %s125, %s139
    %p141 = scmp.eq.s32.totalorder %s17, 0
    %p142 = por %p140, %p141
    %s143 = ssub.s32 %s18, %s30
    %s144 = ssub.s32 %s19, %s26
    %s145 = sor.u32 %s143, %s144
    %p146 = scmp.eq.s32.totalorder %s145, 0
    %s148 = sadd.s32 %s147, 1
    %s149 = scalar_select %p146, %s147, %s148
    %p152 = pneg %p146
    %p153 = scmp.eq.s32.totalorder %s11, 1
    %p154 = por %p152, %p153
    %p155 = scmp.ne.s32.totalorder %s147, %s150
    %p156 = scmp.eq.s32.totalorder %s11, 0
    %p157 = por %p155, %p156
    %p158 = scmp.ne.s32.totalorder %s147, %s150
    %p159 = scmp.eq.s32.totalorder %s16, 1
    %p160 = por %p158, %p159
    %p161 = scmp.ne.s32.totalorder %s150, %s151
    %p162 = scmp.eq.s32.totalorder %s16, 0
    %p163 = por %p161, %p162
    %p164 = scmp.ne.s32.totalorder %s150, %s151
    %p165 = scmp.eq.s32.totalorder %s17, 1
    %p166 = por %p164, %p165
    %p168 = scmp.ne.s32.totalorder %s151, %s167
    %p169 = scmp.eq.s32.totalorder %s17, 0
    %p170 = por %p168, %p169
    %p171 = scmp.le.s32.totalorder 1, %s11
    %p172 = scmp.lt.s32.totalorder %s11, 3
    %p173 = pnand %p171, %p172
    %p174 = pneg %p173
    // Predicated region
    $region9: #{predictor_forward.3} parent=5 // pred_check
      _
    $region10: #{predictor_forward.3} parent=5 // pred_check_branch
      %176 = sbr.rel (%p173) target = $region12
    $region11: #{predictor_forward.3} parent=5 // pred_region
      %s177 = ssub.s32 %s11, 1
      // Predicated region
      $region13: #{predictor_forward.3} parent=11 // pred_check
        %p178 = pneg %p72
      $region14: #{predictor_forward.3} parent=11 // pred_check_branch
        %180 = sbr.rel (%p178) target = $region16
      $region15: #{predictor_forward.3} parent=11 // pred_region
        _
      $region16: #{predictor_forward.3} parent=11 // pred_fallthru
        _
      // Predicated region
      $region17: #{predictor_forward.3} parent=11 // pred_check
        %p181 = pneg %p93
      $region18: #{predictor_forward.3} parent=11 // pred_check_branch
        %183 = sbr.rel (%p181) target = $region20
      $region19: #{predictor_forward.3} parent=11 // pred_region
        _
      $region20: #{predictor_forward.3} parent=11 // pred_fallthru
        _
      // Predicated region
      $region21: #{predictor_forward.3} parent=11 // pred_check
        %p184 = pneg %p114
      $region22: #{predictor_forward.3} parent=11 // pred_check_branch
        %186 = sbr.rel (%p184) target = $region24
      $region23: #{predictor_forward.3} parent=11 // pred_region
        _
      $region24: #{predictor_forward.3} parent=11 // pred_fallthru
        _
      // Predicated region
      $region25: #{predictor_forward.3} parent=11 // pred_check
        %p187 = pneg %p135
      $region26: #{predictor_forward.3} parent=11 // pred_check_branch
        %189 = sbr.rel (%p187) target = $region28
      $region27: #{predictor_forward.3} parent=11 // pred_region
        _
      $region28: #{predictor_forward.3} parent=11 // pred_fallthru
        _
    $region12: #{predictor_forward.3} parent=5 // pred_fallthru
      _
    %p190 = scmp.lt.s32.totalorder %s11, 2
    // Predicated region
    $region29: #{predictor_forward.3} parent=5 // pred_check
      %p191 = pneg %p190
    $region30: #{predictor_forward.3} parent=5 // pred_check_branch
      %193 = sbr.rel (%p191) target = $region32
    $region31: #{predictor_forward.3} parent=5 // pred_region
      // Predicated region
      $region33: #{predictor_forward.3} parent=31 // pred_check
        %p194 = pneg %p45
      $region34: #{predictor_forward.3} parent=31 // pred_check_branch
        %196 = sbr.rel (%p194) target = $region36
      $region35: #{predictor_forward.3} parent=31 // pred_region
        %s197 = smul.u32 2, %s19
        %p198 = scmp.lt.s32.totalorder %s18, 1
        %s199 = scalar_select %p198, %s18, 1
        %p200 = scmp.lt.s32.totalorder %s197, 1
        %s201 = scalar_select %p200, %s197, 1
        %s202 = smul.addr %s199, 8
        %s203 = sadd.s32 %s201, %s202
        %s204 = smul.addr %s203, 8
        %s205 = scalar_lea.vmem %s0, %s204
        %s206 = smul.u32 2, %s19
      $region36: #{predictor_forward.3} parent=31 // pred_fallthru
        _
    $region32: #{predictor_forward.3} parent=5 // pred_fallthru
      _
    %p207 = scmp.le.s32.totalorder 1, %s11
    %p208 = scmp.lt.s32.totalorder %s11, 3
    %p209 = pnand %p207, %p208
    %p210 = pneg %p209
    // Predicated region
    $region37: #{predictor_forward.3} parent=5 // pred_check
      _
    $region38: #{predictor_forward.3} parent=5 // pred_check_branch
      %212 = sbr.rel (%p209) target = $region40
    $region39: #{predictor_forward.3} parent=5 // pred_region
      %s213 = ssub.s32 %s11, 1
      %s214 = smul.u32 2, %s21
      %p215 = scmp.lt.s32.totalorder %s20, 1
      %s216 = scalar_select %p215, %s20, 1
      %p217 = scmp.lt.s32.totalorder %s214, 1
      %s218 = scalar_select %p217, %s214, 1
      %s219 = smul.addr %s216, 8
      %s220 = sadd.s32 %s218, %s219
      %s221 = smul.addr %s220, 8
      %s222 = scalar_lea.vmem %s0, %s221
      %p223 = pneg %p51
      %p224 = pneg %p48
      %p225 = pneg %p72
      %p226 = pneg %p69
      %p227 = pneg %p93
      %p228 = pneg %p90
      %p229 = pneg %p114
      %p230 = pneg %p111
      %p231 = pneg %p135
      %p232 = pneg %p132
      %p233 = pneg %p163
      %p234 = pneg %p160
      %s235 = smul.u32 2, %s21
      %p236 = scmp.lt.s32.totalorder %s20, 1
      %s237 = scalar_select %p236, %s20, 1
      %p238 = scmp.lt.s32.totalorder %s235, 1
      %s239 = scalar_select %p238, %s235, 1
      %s240 = smul.addr %s237, 8
      %s241 = sadd.s32 %s239, %s240
      %s242 = smul.addr %s241, 8
      %s243 = scalar_lea.vmem %s5, %s242
      %s244 = smul.u32 2, %s21
      %p245 = scmp.lt.s32.totalorder %s20, 1
      %s246 = scalar_select %p245, %s20, 1
      %p247 = scmp.lt.s32.totalorder %s244, 1
      %s248 = scalar_select %p247, %s244, 1
      %s249 = smul.addr %s246, 8
      %s250 = sadd.s32 %s248, %s249
      %s251 = smul.addr %s250, 8
      %s252 = scalar_lea.vmem %s0, %s251
      %s253 = smul.u32 2, %s21
      %s254 = smul.u32 2, %s21
      %p255 = scmp.lt.s32.totalorder %s20, 1
      %s256 = scalar_select %p255, %s20, 1
      %p257 = scmp.lt.s32.totalorder %s254, 1
      %s258 = scalar_select %p257, %s254, 1
      %s259 = smul.addr %s256, 8
      %s260 = sadd.s32 %s258, %s259
      %s261 = smul.addr %s260, 8
      %s262 = scalar_lea.vmem %s5, %s261
      %s263 = smul.u32 2, %s21
      %v265 = vld [vmem:[%s252] sm:$0xff]
      %v266 = vld [vmem:[%s252 + $0x8] sm:$0xff]
      %v267 = vld [vmem:[%s252 + $0x10] sm:$0xff]
      %v268 = vld [vmem:[%s252 + $0x18] sm:$0xff]
      %v269 = vld [vmem:[%s252 + $0x20] sm:$0xff]
      %v270 = vld [vmem:[%s252 + $0x28] sm:$0xff]
      %v271 = vld [vmem:[%s252 + $0x30] sm:$0xff]
      %v272 = vld [vmem:[%s252 + $0x38] sm:$0xff]
      %v273 = vpack.c.bf16 %v267, %v265
      %v274 = vpack.c.bf16 %v268, %v266
      %v275 = vpack.c.bf16 %v271, %v269
      %v276 = vpack.c.bf16 %v272, %v270
      %v277 = vld [vmem:[%s1] sm:$0xf]
      %v278 = vld [vmem:[%s1 + $0x4] sm:$0xf]
      %v279 = vld [vmem:[%s1 + $0x8] sm:$0xf]
      %v280 = vld [vmem:[%s1 + $0xc] sm:$0xf]
      %v281 = vld [vmem:[%s1 + $0x10] sm:$0xf]
      %v282 = vld [vmem:[%s1 + $0x14] sm:$0xf]
      %v283 = vld [vmem:[%s1 + $0x18] sm:$0xf]
      %v284 = vld [vmem:[%s1 + $0x1c] sm:$0xf]
      %v285 = vld [vmem:[%s1 + $0x20] sm:$0xf]
      %v286 = vld [vmem:[%s1 + $0x24] sm:$0xf]
      %v287 = vld [vmem:[%s1 + $0x28] sm:$0xf]
      %v288 = vld [vmem:[%s1 + $0x2c] sm:$0xf]
      %v289 = vld [vmem:[%s1 + $0x30] sm:$0xf]
      %v290 = vld [vmem:[%s1 + $0x34] sm:$0xf]
      %v291 = vld [vmem:[%s1 + $0x38] sm:$0xf]
      %v292 = vld [vmem:[%s1 + $0x3c] sm:$0xf]
      %v293 = vld [vmem:[%s1 + $0x40] sm:$0xf]
      %v294 = vld [vmem:[%s1 + $0x44] sm:$0xf]
      %v295 = vld [vmem:[%s1 + $0x48] sm:$0xf]
      %v296 = vld [vmem:[%s1 + $0x4c] sm:$0xf]
      %v297 = vld [vmem:[%s1 + $0x50] sm:$0xf]
      %v298 = vld [vmem:[%s1 + $0x54] sm:$0xf]
      %v299 = vld [vmem:[%s1 + $0x58] sm:$0xf]
      %v300 = vld [vmem:[%s1 + $0x5c] sm:$0xf]
      %v301 = vld [vmem:[%s1 + $0x60] sm:$0xf]
      %v302 = vld [vmem:[%s1 + $0x64] sm:$0xf]
      %v303 = vld [vmem:[%s1 + $0x68] sm:$0xf]
      %v304 = vld [vmem:[%s1 + $0x6c] sm:$0xf]
      %v305 = vld [vmem:[%s1 + $0x70] sm:$0xf]
      %v306 = vld [vmem:[%s1 + $0x74] sm:$0xf]
      %v307 = vld [vmem:[%s1 + $0x78] sm:$0xf]
      %v308 = vld [vmem:[%s1 + $0x7c] sm:$0xf]
      %v341 = vunpack.c.l.b16 %v277
      %v342 = vunpack.c.l.b16 %v278
      %v343 = vunpack.c.l.b16 %v279
      %v344 = vunpack.c.l.b16 %v280
      %v345 = vunpack.c.l.b16 %v281
      %v346 = vunpack.c.l.b16 %v282
      %v347 = vunpack.c.l.b16 %v283
      %v348 = vunpack.c.l.b16 %v284
      %v349 = vunpack.c.l.b16 %v285
      %v350 = vunpack.c.l.b16 %v286
      %v351 = vunpack.c.l.b16 %v287
      %v352 = vunpack.c.l.b16 %v288
      %v353 = vunpack.c.l.b16 %v289
      %v354 = vunpack.c.l.b16 %v290
      %v355 = vunpack.c.l.b16 %v291
      %v356 = vunpack.c.l.b16 %v292
      %v357 = vunpack.c.l.b16 %v293
      %v358 = vunpack.c.l.b16 %v294
      %v359 = vunpack.c.l.b16 %v295
      %v360 = vunpack.c.l.b16 %v296
      %v361 = vunpack.c.l.b16 %v297
      %v362 = vunpack.c.l.b16 %v298
      %v363 = vunpack.c.l.b16 %v299
      %v364 = vunpack.c.l.b16 %v300
      %v365 = vunpack.c.l.b16 %v301
      %v366 = vunpack.c.l.b16 %v302
      %v367 = vunpack.c.l.b16 %v303
      %v368 = vunpack.c.l.b16 %v304
      %v369 = vunpack.c.l.b16 %v305
      %v370 = vunpack.c.l.b16 %v306
      %v371 = vunpack.c.l.b16 %v307
      %v372 = vunpack.c.l.b16 %v308
      %v373 = vpack.c.b16 %v342, %v341
      %v374 = vpack.c.b16 %v344, %v343
      %v375 = vpack.c.b16 %v346, %v345
      %v376 = vpack.c.b16 %v348, %v347
      %v377 = vpack.c.b16 %v350, %v349
      %v378 = vpack.c.b16 %v352, %v351
      %v379 = vpack.c.b16 %v354, %v353
      %v380 = vpack.c.b16 %v356, %v355
      %v381 = vpack.c.b16 %v358, %v357
      %v382 = vpack.c.b16 %v360, %v359
      %v383 = vpack.c.b16 %v362, %v361
      %v384 = vpack.c.b16 %v364, %v363
      %v385 = vpack.c.b16 %v366, %v365
      %v386 = vpack.c.b16 %v368, %v367
      %v387 = vpack.c.b16 %v370, %v369
      %v388 = vpack.c.b16 %v372, %v371
      %vm389 = vcmask 261120
      %v391 = vsel %vm389, %v373, 0
      %v394 = vsel %vm389, %v374, 0
      %v397 = vsel %vm389, %v375, 0
      %v400 = vsel %vm389, %v376, 0
      %v403 = vsel %vm389, %v377, 0
      %v406 = vsel %vm389, %v378, 0
      %v409 = vsel %vm389, %v379, 0
      %v412 = vsel %vm389, %v380, 0
      %v415 = vsel %vm389, %v381, 0
      %v418 = vsel %vm389, %v382, 0
      %v421 = vsel %vm389, %v383, 0
      %v424 = vsel %vm389, %v384, 0
      %v427 = vsel %vm389, %v385, 0
      %v430 = vsel %vm389, %v386, 0
      %v433 = vsel %vm389, %v387, 0
      %v436 = vsel %vm389, %v388, 0
      %438 = vmatpush.bf16.msra.mxu0 0
      %439 = vmatpush.bf16.msra.mxu0 0
      %440 = vmatpush.bf16.msra.mxu0 0
      %441 = vmatpush.bf16.msra.mxu0 0
      %442 = vmatpush.bf16.msra.mxu0 0
      %443 = vmatpush.bf16.msra.mxu0 0
      %444 = vmatpush.bf16.msra.mxu0 %v275
      %445 = vmatpush.bf16.msra.mxu0 %v273
      %446 = vmatmul.bf16.gmra.mxu0 %v391
      %v447 = vpop.f32.mrf.mxu0
      %v448 = vadd.f32 0.0, %v447
      %v449 = vpop.f32.mrf.mxu0
      %v450 = vadd.f32 0.0, %v449
      %451 = vmatmul.bf16.gmra.mxu0 %v394
      %v452 = vpop.f32.mrf.mxu0
      %v453 = vadd.f32 0.0, %v452
      %v454 = vpop.f32.mrf.mxu0
      %v455 = vadd.f32 0.0, %v454
      %456 = vmatmul.bf16.gmra.mxu0 %v397
      %v457 = vpop.f32.mrf.mxu0
      %v458 = vadd.f32 0.0, %v457
      %v459 = vpop.f32.mrf.mxu0
      %v460 = vadd.f32 0.0, %v459
      %461 = vmatmul.bf16.gmra.mxu0 %v400
      %v462 = vpop.f32.mrf.mxu0
      %v463 = vadd.f32 0.0, %v462
      %v464 = vpop.f32.mrf.mxu0
      %v465 = vadd.f32 0.0, %v464
      %466 = vmatmul.bf16.gmra.mxu0 %v403
      %v467 = vpop.f32.mrf.mxu0
      %v468 = vadd.f32 0.0, %v467
      %v469 = vpop.f32.mrf.mxu0
      %v470 = vadd.f32 0.0, %v469
      %471 = vmatmul.bf16.gmra.mxu0 %v406
      %v472 = vpop.f32.mrf.mxu0
      %v473 = vadd.f32 0.0, %v472
      %v474 = vpop.f32.mrf.mxu0
      %v475 = vadd.f32 0.0, %v474
      %476 = vmatmul.bf16.gmra.mxu0 %v409
      %v477 = vpop.f32.mrf.mxu0
      %v478 = vadd.f32 0.0, %v477
      %v479 = vpop.f32.mrf.mxu0
      %v480 = vadd.f32 0.0, %v479
      %481 = vmatmul.bf16.gmra.mxu0 %v412
      %v482 = vpop.f32.mrf.mxu0
      %v483 = vadd.f32 0.0, %v482
      %v484 = vpop.f32.mrf.mxu0
      %v485 = vadd.f32 0.0, %v484
      %486 = vmatmul.bf16.gmra.mxu0 %v415
      %v487 = vpop.f32.mrf.mxu0
      %v488 = vadd.f32 0.0, %v487
      %v489 = vpop.f32.mrf.mxu0
      %v490 = vadd.f32 0.0, %v489
      %491 = vmatmul.bf16.gmra.mxu0 %v418
      %v492 = vpop.f32.mrf.mxu0
      %v493 = vadd.f32 0.0, %v492
      %v494 = vpop.f32.mrf.mxu0
      %v495 = vadd.f32 0.0, %v494
      %496 = vmatmul.bf16.gmra.mxu0 %v421
      %v497 = vpop.f32.mrf.mxu0
      %v498 = vadd.f32 0.0, %v497
      %v499 = vpop.f32.mrf.mxu0
      %v500 = vadd.f32 0.0, %v499
      %501 = vmatmul.bf16.gmra.mxu0 %v424
      %v502 = vpop.f32.mrf.mxu0
      %v503 = vadd.f32 0.0, %v502
      %v504 = vpop.f32.mrf.mxu0
      %v505 = vadd.f32 0.0, %v504
      %506 = vmatmul.bf16.gmra.mxu0 %v427
      %v507 = vpop.f32.mrf.mxu0
      %v508 = vadd.f32 0.0, %v507
      %v509 = vpop.f32.mrf.mxu0
      %v510 = vadd.f32 0.0, %v509
      %511 = vmatmul.bf16.gmra.mxu0 %v430
      %v512 = vpop.f32.mrf.mxu0
      %v513 = vadd.f32 0.0, %v512
      %v514 = vpop.f32.mrf.mxu0
      %v515 = vadd.f32 0.0, %v514
      %516 = vmatmul.bf16.gmra.mxu0 %v433
      %v517 = vpop.f32.mrf.mxu0
      %v518 = vadd.f32 0.0, %v517
      %v519 = vpop.f32.mrf.mxu0
      %v520 = vadd.f32 0.0, %v519
      %521 = vmatmul.bf16.gmra.mxu0 %v436
      %v522 = vpop.f32.mrf.mxu0
      %v523 = vadd.f32 0.0, %v522
      %v524 = vpop.f32.mrf.mxu0
      %v525 = vadd.f32 0.0, %v524
      %526 = vdwg.mxu0
      %527 = vmatpush.bf16.msra.mxu0 0
      %528 = vmatpush.bf16.msra.mxu0 0
      %529 = vmatpush.bf16.msra.mxu0 0
      %530 = vmatpush.bf16.msra.mxu0 0
      %531 = vmatpush.bf16.msra.mxu0 0
      %532 = vmatpush.bf16.msra.mxu0 0
      %533 = vmatpush.bf16.msra.mxu0 %v276
      %534 = vmatpush.bf16.msra.mxu0 %v274
      %535 = vmatmul.bf16.gmra.mxu0 %v391
      %v536 = vpop.f32.mrf.mxu0
      %v537 = vadd.f32 0.0, %v536
      %v538 = vpop.f32.mrf.mxu0
      %v539 = vadd.f32 0.0, %v538
      %540 = vmatmul.bf16.gmra.mxu0 %v394
      %v541 = vpop.f32.mrf.mxu0
      %v542 = vadd.f32 0.0, %v541
      %v543 = vpop.f32.mrf.mxu0
      %v544 = vadd.f32 0.0, %v543
      %545 = vmatmul.bf16.gmra.mxu0 %v397
      %v546 = vpop.f32.mrf.mxu0
      %v547 = vadd.f32 0.0, %v546
      %v548 = vpop.f32.mrf.mxu0
      %v549 = vadd.f32 0.0, %v548
      %550 = vmatmul.bf16.gmra.mxu0 %v400
      %v551 = vpop.f32.mrf.mxu0
      %v552 = vadd.f32 0.0, %v551
      %v553 = vpop.f32.mrf.mxu0
      %v554 = vadd.f32 0.0, %v553
      %555 = vmatmul.bf16.gmra.mxu0 %v403
      %v556 = vpop.f32.mrf.mxu0
      %v557 = vadd.f32 0.0, %v556
      %v558 = vpop.f32.mrf.mxu0
      %v559 = vadd.f32 0.0, %v558
      %560 = vmatmul.bf16.gmra.mxu0 %v406
      %v561 = vpop.f32.mrf.mxu0
      %v562 = vadd.f32 0.0, %v561
      %v563 = vpop.f32.mrf.mxu0
      %v564 = vadd.f32 0.0, %v563
      %565 = vmatmul.bf16.gmra.mxu0 %v409
      %v566 = vpop.f32.mrf.mxu0
      %v567 = vadd.f32 0.0, %v566
      %v568 = vpop.f32.mrf.mxu0
      %v569 = vadd.f32 0.0, %v568
      %570 = vmatmul.bf16.gmra.mxu0 %v412
      %v571 = vpop.f32.mrf.mxu0
      %v572 = vadd.f32 0.0, %v571
      %v573 = vpop.f32.mrf.mxu0
      %v574 = vadd.f32 0.0, %v573
      %575 = vmatmul.bf16.gmra.mxu0 %v415
      %v576 = vpop.f32.mrf.mxu0
      %v577 = vadd.f32 0.0, %v576
      %v578 = vpop.f32.mrf.mxu0
      %v579 = vadd.f32 0.0, %v578
      %580 = vmatmul.bf16.gmra.mxu0 %v418
      %v581 = vpop.f32.mrf.mxu0
      %v582 = vadd.f32 0.0, %v581
      %v583 = vpop.f32.mrf.mxu0
      %v584 = vadd.f32 0.0, %v583
      %585 = vmatmul.bf16.gmra.mxu0 %v421
      %v586 = vpop.f32.mrf.mxu0
      %v587 = vadd.f32 0.0, %v586
      %v588 = vpop.f32.mrf.mxu0
      %v589 = vadd.f32 0.0, %v588
      %590 = vmatmul.bf16.gmra.mxu0 %v424
      %v591 = vpop.f32.mrf.mxu0
      %v592 = vadd.f32 0.0, %v591
      %v593 = vpop.f32.mrf.mxu0
      %v594 = vadd.f32 0.0, %v593
      %595 = vmatmul.bf16.gmra.mxu0 %v427
      %v596 = vpop.f32.mrf.mxu0
      %v597 = vadd.f32 0.0, %v596
      %v598 = vpop.f32.mrf.mxu0
      %v599 = vadd.f32 0.0, %v598
      %600 = vmatmul.bf16.gmra.mxu0 %v430
      %v601 = vpop.f32.mrf.mxu0
      %v602 = vadd.f32 0.0, %v601
      %v603 = vpop.f32.mrf.mxu0
      %v604 = vadd.f32 0.0, %v603
      %605 = vmatmul.bf16.gmra.mxu0 %v433
      %v606 = vpop.f32.mrf.mxu0
      %v607 = vadd.f32 0.0, %v606
      %v608 = vpop.f32.mrf.mxu0
      %v609 = vadd.f32 0.0, %v608
      %610 = vmatmul.bf16.gmra.mxu0 %v436
      %v611 = vpop.f32.mrf.mxu0
      %v612 = vadd.f32 0.0, %v611
      %v613 = vpop.f32.mrf.mxu0
      %v614 = vadd.f32 0.0, %v613
      %615 = vdwg.mxu0
      %v616 = vld [vmem:[%s3] sm:$0xff]
      %v617 = vld [vmem:[%s3 + $0x8] sm:$0xff]
      %v618 = vld [vmem:[%s3 + $0x10] sm:$0xff]
      %v619 = vld [vmem:[%s3 + $0x18] sm:$0xff]
      %v620 = vld [vmem:[%s3 + $0x20] sm:$0xff]
      %v621 = vld [vmem:[%s3 + $0x28] sm:$0xff]
      %v622 = vld [vmem:[%s3 + $0x30] sm:$0xff]
      %v623 = vld [vmem:[%s3 + $0x38] sm:$0xff]
      %v624 = vld [vmem:[%s3 + $0x40] sm:$0xff]
      %v625 = vld [vmem:[%s3 + $0x48] sm:$0xff]
      %v626 = vld [vmem:[%s3 + $0x50] sm:$0xff]
      %v627 = vld [vmem:[%s3 + $0x58] sm:$0xff]
      %v628 = vld [vmem:[%s3 + $0x60] sm:$0xff]
      %v629 = vld [vmem:[%s3 + $0x68] sm:$0xff]
      %v630 = vld [vmem:[%s3 + $0x70] sm:$0xff]
      %v631 = vld [vmem:[%s3 + $0x78] sm:$0xff]
      %v632 = vld [vmem:[%s3 + $0x80] sm:$0xff]
      %v633 = vld [vmem:[%s3 + $0x88] sm:$0xff]
      %v634 = vld [vmem:[%s3 + $0x90] sm:$0xff]
      %v635 = vld [vmem:[%s3 + $0x98] sm:$0xff]
      %v636 = vld [vmem:[%s3 + $0xa0] sm:$0xff]
      %v637 = vld [vmem:[%s3 + $0xa8] sm:$0xff]
      %v638 = vld [vmem:[%s3 + $0xb0] sm:$0xff]
      %v639 = vld [vmem:[%s3 + $0xb8] sm:$0xff]
      %v640 = vld [vmem:[%s3 + $0xc0] sm:$0xff]
      %v641 = vld [vmem:[%s3 + $0xc8] sm:$0xff]
      %v642 = vld [vmem:[%s3 + $0xd0] sm:$0xff]
      %v643 = vld [vmem:[%s3 + $0xd8] sm:$0xff]
      %v644 = vld [vmem:[%s3 + $0xe0] sm:$0xff]
      %v645 = vld [vmem:[%s3 + $0xe8] sm:$0xff]
      %v646 = vld [vmem:[%s3 + $0xf0] sm:$0xff]
      %v647 = vld [vmem:[%s3 + $0xf8] sm:$0xff]
      %649 = vset.pattern.permute.xlu0 0
      %650 = vperm.xlu0 %649, %v616
      %v651 = vpop.permute.xlu0 %650
      %654 = vset.pattern.permute.xlu0 0
      %655 = vperm.xlu0 %654, %v617
      %v656 = vpop.permute.xlu0 %655
      %659 = vset.pattern.permute.xlu0 0
      %660 = vperm.xlu0 %659, %v618
      %v661 = vpop.permute.xlu0 %660
      %664 = vset.pattern.permute.xlu0 0
      %665 = vperm.xlu0 %664, %v619
      %v666 = vpop.permute.xlu0 %665
      %669 = vset.pattern.permute.xlu0 0
      %670 = vperm.xlu0 %669, %v620
      %v671 = vpop.permute.xlu0 %670
      %674 = vset.pattern.permute.xlu0 0
      %675 = vperm.xlu0 %674, %v621
      %v676 = vpop.permute.xlu0 %675
      %679 = vset.pattern.permute.xlu0 0
      %680 = vperm.xlu0 %679, %v622
      %v681 = vpop.permute.xlu0 %680
      %684 = vset.pattern.permute.xlu0 0
      %685 = vperm.xlu0 %684, %v623
      %v686 = vpop.permute.xlu0 %685
      %689 = vset.pattern.permute.xlu0 0
      %690 = vperm.xlu0 %689, %v624
      %v691 = vpop.permute.xlu0 %690
      %694 = vset.pattern.permute.xlu0 0
      %695 = vperm.xlu0 %694, %v625
      %v696 = vpop.permute.xlu0 %695
      %699 = vset.pattern.permute.xlu0 0
      %700 = vperm.xlu0 %699, %v626
      %v701 = vpop.permute.xlu0 %700
      %704 = vset.pattern.permute.xlu0 0
      %705 = vperm.xlu0 %704, %v627
      %v706 = vpop.permute.xlu0 %705
      %709 = vset.pattern.permute.xlu0 0
      %710 = vperm.xlu0 %709, %v628
      %v711 = vpop.permute.xlu0 %710
      %714 = vset.pattern.permute.xlu0 0
      %715 = vperm.xlu0 %714, %v629
      %v716 = vpop.permute.xlu0 %715
      %719 = vset.pattern.permute.xlu0 0
      %720 = vperm.xlu0 %719, %v630
      %v721 = vpop.permute.xlu0 %720
      %724 = vset.pattern.permute.xlu0 0
      %725 = vperm.xlu0 %724, %v631
      %v726 = vpop.permute.xlu0 %725
      %729 = vset.pattern.permute.xlu0 0
      %730 = vperm.xlu0 %729, %v632
      %v731 = vpop.permute.xlu0 %730
      %734 = vset.pattern.permute.xlu0 0
      %735 = vperm.xlu0 %734, %v633
      %v736 = vpop.permute.xlu0 %735
      %739 = vset.pattern.permute.xlu0 0
      %740 = vperm.xlu0 %739, %v634
      %v741 = vpop.permute.xlu0 %740
      %744 = vset.pattern.permute.xlu0 0
      %745 = vperm.xlu0 %744, %v635
      %v746 = vpop.permute.xlu0 %745
      %749 = vset.pattern.permute.xlu0 0
      %750 = vperm.xlu0 %749, %v636
      %v751 = vpop.permute.xlu0 %750
      %754 = vset.pattern.permute.xlu0 0
      %755 = vperm.xlu0 %754, %v637
      %v756 = vpop.permute.xlu0 %755
      %759 = vset.pattern.permute.xlu0 0
      %760 = vperm.xlu0 %759, %v638
      %v761 = vpop.permute.xlu0 %760
      %764 = vset.pattern.permute.xlu0 0
      %765 = vperm.xlu0 %764, %v639
      %v766 = vpop.permute.xlu0 %765
      %769 = vset.pattern.permute.xlu0 0
      %770 = vperm.xlu0 %769, %v640
      %v771 = vpop.permute.xlu0 %770
      %774 = vset.pattern.permute.xlu0 0
      %775 = vperm.xlu0 %774, %v641
      %v776 = vpop.permute.xlu0 %775
      %779 = vset.pattern.permute.xlu0 0
      %780 = vperm.xlu0 %779, %v642
      %v781 = vpop.permute.xlu0 %780
      %784 = vset.pattern.permute.xlu0 0
      %785 = vperm.xlu0 %784, %v643
      %v786 = vpop.permute.xlu0 %785
      %789 = vset.pattern.permute.xlu0 0
      %790 = vperm.xlu0 %789, %v644
      %v791 = vpop.permute.xlu0 %790
      %794 = vset.pattern.permute.xlu0 0
      %795 = vperm.xlu0 %794, %v645
      %v796 = vpop.permute.xlu0 %795
      %799 = vset.pattern.permute.xlu0 0
      %800 = vperm.xlu0 %799, %v646
      %v801 = vpop.permute.xlu0 %800
      %804 = vset.pattern.permute.xlu0 0
      %805 = vperm.xlu0 %804, %v647
      %v806 = vpop.permute.xlu0 %805
      %v808 = vmul.f32 %v448, %v651
      %v809 = vmul.f32 %v537, %v651
      %v810 = vmul.f32 %v450, %v656
      %v811 = vmul.f32 %v539, %v656
      %v812 = vmul.f32 %v453, %v661
      %v813 = vmul.f32 %v542, %v661
      %v814 = vmul.f32 %v455, %v666
      %v815 = vmul.f32 %v544, %v666
      %v816 = vmul.f32 %v458, %v671
      %v817 = vmul.f32 %v547, %v671
      %v818 = vmul.f32 %v460, %v676
      %v819 = vmul.f32 %v549, %v676
      %v820 = vmul.f32 %v463, %v681
      %v821 = vmul.f32 %v552, %v681
      %v822 = vmul.f32 %v465, %v686
      %v823 = vmul.f32 %v554, %v686
      %v824 = vmul.f32 %v468, %v691
      %v825 = vmul.f32 %v557, %v691
      %v826 = vmul.f32 %v470, %v696
      %v827 = vmul.f32 %v559, %v696
      %v828 = vmul.f32 %v473, %v701
      %v829 = vmul.f32 %v562, %v701
      %v830 = vmul.f32 %v475, %v706
      %v831 = vmul.f32 %v564, %v706
      %v832 = vmul.f32 %v478, %v711
      %v833 = vmul.f32 %v567, %v711
      %v834 = vmul.f32 %v480, %v716
      %v835 = vmul.f32 %v569, %v716
      %v836 = vmul.f32 %v483, %v721
      %v837 = vmul.f32 %v572, %v721
      %v838 = vmul.f32 %v485, %v726
      %v839 = vmul.f32 %v574, %v726
      %v840 = vmul.f32 %v488, %v731
      %v841 = vmul.f32 %v577, %v731
      %v842 = vmul.f32 %v490, %v736
      %v843 = vmul.f32 %v579, %v736
      %v844 = vmul.f32 %v493, %v741
      %v845 = vmul.f32 %v582, %v741
      %v846 = vmul.f32 %v495, %v746
      %v847 = vmul.f32 %v584, %v746
      %v848 = vmul.f32 %v498, %v751
      %v849 = vmul.f32 %v587, %v751
      %v850 = vmul.f32 %v500, %v756
      %v851 = vmul.f32 %v589, %v756
      %v852 = vmul.f32 %v503, %v761
      %v853 = vmul.f32 %v592, %v761
      %v854 = vmul.f32 %v505, %v766
      %v855 = vmul.f32 %v594, %v766
      %v856 = vmul.f32 %v508, %v771
      %v857 = vmul.f32 %v597, %v771
      %v858 = vmul.f32 %v510, %v776
      %v859 = vmul.f32 %v599, %v776
      %v860 = vmul.f32 %v513, %v781
      %v861 = vmul.f32 %v602, %v781
      %v862 = vmul.f32 %v515, %v786
      %v863 = vmul.f32 %v604, %v786
      %v864 = vmul.f32 %v518, %v791
      %v865 = vmul.f32 %v607, %v791
      %v866 = vmul.f32 %v520, %v796
      %v867 = vmul.f32 %v609, %v796
      %v868 = vmul.f32 %v523, %v801
      %v869 = vmul.f32 %v612, %v801
      %v870 = vmul.f32 %v525, %v806
      %v871 = vmul.f32 %v614, %v806
      %v872 = vld [vmem:[%s4] sm:$0xff]
      %v873 = vld [vmem:[%s4 + $0x8] sm:$0xff]
      %v874 = vld [vmem:[%s4 + $0x10] sm:$0xff]
      %v875 = vld [vmem:[%s4 + $0x18] sm:$0xff]
      %v876 = vld [vmem:[%s4 + $0x20] sm:$0xff]
      %v877 = vld [vmem:[%s4 + $0x28] sm:$0xff]
      %v878 = vld [vmem:[%s4 + $0x30] sm:$0xff]
      %v879 = vld [vmem:[%s4 + $0x38] sm:$0xff]
      %v880 = vld [vmem:[%s4 + $0x40] sm:$0xff]
      %v881 = vld [vmem:[%s4 + $0x48] sm:$0xff]
      %v882 = vld [vmem:[%s4 + $0x50] sm:$0xff]
      %v883 = vld [vmem:[%s4 + $0x58] sm:$0xff]
      %v884 = vld [vmem:[%s4 + $0x60] sm:$0xff]
      %v885 = vld [vmem:[%s4 + $0x68] sm:$0xff]
      %v886 = vld [vmem:[%s4 + $0x70] sm:$0xff]
      %v887 = vld [vmem:[%s4 + $0x78] sm:$0xff]
      %v888 = vld [vmem:[%s4 + $0x80] sm:$0xff]
      %v889 = vld [vmem:[%s4 + $0x88] sm:$0xff]
      %v890 = vld [vmem:[%s4 + $0x90] sm:$0xff]
      %v891 = vld [vmem:[%s4 + $0x98] sm:$0xff]
      %v892 = vld [vmem:[%s4 + $0xa0] sm:$0xff]
      %v893 = vld [vmem:[%s4 + $0xa8] sm:$0xff]
      %v894 = vld [vmem:[%s4 + $0xb0] sm:$0xff]
      %v895 = vld [vmem:[%s4 + $0xb8] sm:$0xff]
      %v896 = vld [vmem:[%s4 + $0xc0] sm:$0xff]
      %v897 = vld [vmem:[%s4 + $0xc8] sm:$0xff]
      %v898 = vld [vmem:[%s4 + $0xd0] sm:$0xff]
      %v899 = vld [vmem:[%s4 + $0xd8] sm:$0xff]
      %v900 = vld [vmem:[%s4 + $0xe0] sm:$0xff]
      %v901 = vld [vmem:[%s4 + $0xe8] sm:$0xff]
      %v902 = vld [vmem:[%s4 + $0xf0] sm:$0xff]
      %v903 = vld [vmem:[%s4 + $0xf8] sm:$0xff]
      %905 = vset.pattern.permute.xlu0 0
      %906 = vperm.xlu0 %905, %v872
      %v907 = vpop.permute.xlu0 %906
      %910 = vset.pattern.permute.xlu0 0
      %911 = vperm.xlu0 %910, %v873
      %v912 = vpop.permute.xlu0 %911
      %915 = vset.pattern.permute.xlu0 0
      %916 = vperm.xlu0 %915, %v874
      %v917 = vpop.permute.xlu0 %916
      %920 = vset.pattern.permute.xlu0 0
      %921 = vperm.xlu0 %920, %v875
      %v922 = vpop.permute.xlu0 %921
      %925 = vset.pattern.permute.xlu0 0
      %926 = vperm.xlu0 %925, %v876
      %v927 = vpop.permute.xlu0 %926
      %930 = vset.pattern.permute.xlu0 0
      %931 = vperm.xlu0 %930, %v877
      %v932 = vpop.permute.xlu0 %931
      %935 = vset.pattern.permute.xlu0 0
      %936 = vperm.xlu0 %935, %v878
      %v937 = vpop.permute.xlu0 %936
      %940 = vset.pattern.permute.xlu0 0
      %941 = vperm.xlu0 %940, %v879
      %v942 = vpop.permute.xlu0 %941
      %945 = vset.pattern.permute.xlu0 0
      %946 = vperm.xlu0 %945, %v880
      %v947 = vpop.permute.xlu0 %946
      %950 = vset.pattern.permute.xlu0 0
      %951 = vperm.xlu0 %950, %v881
      %v952 = vpop.permute.xlu0 %951
      %955 = vset.pattern.permute.xlu0 0
      %956 = vperm.xlu0 %955, %v882
      %v957 = vpop.permute.xlu0 %956
      %960 = vset.pattern.permute.xlu0 0
      %961 = vperm.xlu0 %960, %v883
      %v962 = vpop.permute.xlu0 %961
      %965 = vset.pattern.permute.xlu0 0
      %966 = vperm.xlu0 %965, %v884
      %v967 = vpop.permute.xlu0 %966
      %970 = vset.pattern.permute.xlu0 0
      %971 = vperm.xlu0 %970, %v885
      %v972 = vpop.permute.xlu0 %971
      %975 = vset.pattern.permute.xlu0 0
      %976 = vperm.xlu0 %975, %v886
      %v977 = vpop.permute.xlu0 %976
      %980 = vset.pattern.permute.xlu0 0
      %981 = vperm.xlu0 %980, %v887
      %v982 = vpop.permute.xlu0 %981
      %985 = vset.pattern.permute.xlu0 0
      %986 = vperm.xlu0 %985, %v888
      %v987 = vpop.permute.xlu0 %986
      %990 = vset.pattern.permute.xlu0 0
      %991 = vperm.xlu0 %990, %v889
      %v992 = vpop.permute.xlu0 %991
      %995 = vset.pattern.permute.xlu0 0
      %996 = vperm.xlu0 %995, %v890
      %v997 = vpop.permute.xlu0 %996
      %1000 = vset.pattern.permute.xlu0 0
      %1001 = vperm.xlu0 %1000, %v891
      %v1002 = vpop.permute.xlu0 %1001
      %1005 = vset.pattern.permute.xlu0 0
      %1006 = vperm.xlu0 %1005, %v892
      %v1007 = vpop.permute.xlu0 %1006
      %1010 = vset.pattern.permute.xlu0 0
      %1011 = vperm.xlu0 %1010, %v893
      %v1012 = vpop.permute.xlu0 %1011
      %1015 = vset.pattern.permute.xlu0 0
      %1016 = vperm.xlu0 %1015, %v894
      %v1017 = vpop.permute.xlu0 %1016
      %1020 = vset.pattern.permute.xlu0 0
      %1021 = vperm.xlu0 %1020, %v895
      %v1022 = vpop.permute.xlu0 %1021
      %1025 = vset.pattern.permute.xlu0 0
      %1026 = vperm.xlu0 %1025, %v896
      %v1027 = vpop.permute.xlu0 %1026
      %1030 = vset.pattern.permute.xlu0 0
      %1031 = vperm.xlu0 %1030, %v897
      %v1032 = vpop.permute.xlu0 %1031
      %1035 = vset.pattern.permute.xlu0 0
      %1036 = vperm.xlu0 %1035, %v898
      %v1037 = vpop.permute.xlu0 %1036
      %1040 = vset.pattern.permute.xlu0 0
      %1041 = vperm.xlu0 %1040, %v899
      %v1042 = vpop.permute.xlu0 %1041
      %1045 = vset.pattern.permute.xlu0 0
      %1046 = vperm.xlu0 %1045, %v900
      %v1047 = vpop.permute.xlu0 %1046
      %1050 = vset.pattern.permute.xlu0 0
      %1051 = vperm.xlu0 %1050, %v901
      %v1052 = vpop.permute.xlu0 %1051
      %1055 = vset.pattern.permute.xlu0 0
      %1056 = vperm.xlu0 %1055, %v902
      %v1057 = vpop.permute.xlu0 %1056
      %1060 = vset.pattern.permute.xlu0 0
      %1061 = vperm.xlu0 %1060, %v903
      %v1062 = vpop.permute.xlu0 %1061
      %v1064 = vadd.f32 %v808, %v907
      %v1065 = vadd.f32 %v809, %v907
      %v1066 = vadd.f32 %v810, %v912
      %v1067 = vadd.f32 %v811, %v912
      %v1068 = vadd.f32 %v812, %v917
      %v1069 = vadd.f32 %v813, %v917
      %v1070 = vadd.f32 %v814, %v922
      %v1071 = vadd.f32 %v815, %v922
      %v1072 = vadd.f32 %v816, %v927
      %v1073 = vadd.f32 %v817, %v927
      %v1074 = vadd.f32 %v818, %v932
      %v1075 = vadd.f32 %v819, %v932
      %v1076 = vadd.f32 %v820, %v937
      %v1077 = vadd.f32 %v821, %v937
      %v1078 = vadd.f32 %v822, %v942
      %v1079 = vadd.f32 %v823, %v942
      %v1080 = vadd.f32 %v824, %v947
      %v1081 = vadd.f32 %v825, %v947
      %v1082 = vadd.f32 %v826, %v952
      %v1083 = vadd.f32 %v827, %v952
      %v1084 = vadd.f32 %v828, %v957
      %v1085 = vadd.f32 %v829, %v957
      %v1086 = vadd.f32 %v830, %v962
      %v1087 = vadd.f32 %v831, %v962
      %v1088 = vadd.f32 %v832, %v967
      %v1089 = vadd.f32 %v833, %v967
      %v1090 = vadd.f32 %v834, %v972
      %v1091 = vadd.f32 %v835, %v972
      %v1092 = vadd.f32 %v836, %v977
      %v1093 = vadd.f32 %v837, %v977
      %v1094 = vadd.f32 %v838, %v982
      %v1095 = vadd.f32 %v839, %v982
      %v1096 = vadd.f32 %v840, %v987
      %v1097 = vadd.f32 %v841, %v987
      %v1098 = vadd.f32 %v842, %v992
      %v1099 = vadd.f32 %v843, %v992
      %v1100 = vadd.f32 %v844, %v997
      %v1101 = vadd.f32 %v845, %v997
      %v1102 = vadd.f32 %v846, %v1002
      %v1103 = vadd.f32 %v847, %v1002
      %v1104 = vadd.f32 %v848, %v1007
      %v1105 = vadd.f32 %v849, %v1007
      %v1106 = vadd.f32 %v850, %v1012
      %v1107 = vadd.f32 %v851, %v1012
      %v1108 = vadd.f32 %v852, %v1017
      %v1109 = vadd.f32 %v853, %v1017
      %v1110 = vadd.f32 %v854, %v1022
      %v1111 = vadd.f32 %v855, %v1022
      %v1112 = vadd.f32 %v856, %v1027
      %v1113 = vadd.f32 %v857, %v1027
      %v1114 = vadd.f32 %v858, %v1032
      %v1115 = vadd.f32 %v859, %v1032
      %v1116 = vadd.f32 %v860, %v1037
      %v1117 = vadd.f32 %v861, %v1037
      %v1118 = vadd.f32 %v862, %v1042
      %v1119 = vadd.f32 %v863, %v1042
      %v1120 = vadd.f32 %v864, %v1047
      %v1121 = vadd.f32 %v865, %v1047
      %v1122 = vadd.f32 %v866, %v1052
      %v1123 = vadd.f32 %v867, %v1052
      %v1124 = vadd.f32 %v868, %v1057
      %v1125 = vadd.f32 %v869, %v1057
      %v1126 = vadd.f32 %v870, %v1062
      %v1127 = vadd.f32 %v871, %v1062
      %v1128 = vmax.f32 %v1064, 0.0
      %v1129 = vmax.f32 %v1065, 0.0
      %v1130 = vmax.f32 %v1066, 0.0
      %v1131 = vmax.f32 %v1067, 0.0
      %v1132 = vmax.f32 %v1068, 0.0
      %v1133 = vmax.f32 %v1069, 0.0
      %v1134 = vmax.f32 %v1070, 0.0
      %v1135 = vmax.f32 %v1071, 0.0
      %v1136 = vmax.f32 %v1072, 0.0
      %v1137 = vmax.f32 %v1073, 0.0
      %v1138 = vmax.f32 %v1074, 0.0
      %v1139 = vmax.f32 %v1075, 0.0
      %v1140 = vmax.f32 %v1076, 0.0
      %v1141 = vmax.f32 %v1077, 0.0
      %v1142 = vmax.f32 %v1078, 0.0
      %v1143 = vmax.f32 %v1079, 0.0
      %v1144 = vmax.f32 %v1080, 0.0
      %v1145 = vmax.f32 %v1081, 0.0
      %v1146 = vmax.f32 %v1082, 0.0
      %v1147 = vmax.f32 %v1083, 0.0
      %v1148 = vmax.f32 %v1084, 0.0
      %v1149 = vmax.f32 %v1085, 0.0
      %v1150 = vmax.f32 %v1086, 0.0
      %v1151 = vmax.f32 %v1087, 0.0
      %v1152 = vmax.f32 %v1088, 0.0
      %v1153 = vmax.f32 %v1089, 0.0
      %v1154 = vmax.f32 %v1090, 0.0
      %v1155 = vmax.f32 %v1091, 0.0
      %v1156 = vmax.f32 %v1092, 0.0
      %v1157 = vmax.f32 %v1093, 0.0
      %v1158 = vmax.f32 %v1094, 0.0
      %v1159 = vmax.f32 %v1095, 0.0
      %v1160 = vmax.f32 %v1096, 0.0
      %v1161 = vmax.f32 %v1097, 0.0
      %v1162 = vmax.f32 %v1098, 0.0
      %v1163 = vmax.f32 %v1099, 0.0
      %v1164 = vmax.f32 %v1100, 0.0
      %v1165 = vmax.f32 %v1101, 0.0
      %v1166 = vmax.f32 %v1102, 0.0
      %v1167 = vmax.f32 %v1103, 0.0
      %v1168 = vmax.f32 %v1104, 0.0
      %v1169 = vmax.f32 %v1105, 0.0
      %v1170 = vmax.f32 %v1106, 0.0
      %v1171 = vmax.f32 %v1107, 0.0
      %v1172 = vmax.f32 %v1108, 0.0
      %v1173 = vmax.f32 %v1109, 0.0
      %v1174 = vmax.f32 %v1110, 0.0
      %v1175 = vmax.f32 %v1111, 0.0
      %v1176 = vmax.f32 %v1112, 0.0
      %v1177 = vmax.f32 %v1113, 0.0
      %v1178 = vmax.f32 %v1114, 0.0
      %v1179 = vmax.f32 %v1115, 0.0
      %v1180 = vmax.f32 %v1116, 0.0
      %v1181 = vmax.f32 %v1117, 0.0
      %v1182 = vmax.f32 %v1118, 0.0
      %v1183 = vmax.f32 %v1119, 0.0
      %v1184 = vmax.f32 %v1120, 0.0
      %v1185 = vmax.f32 %v1121, 0.0
      %v1186 = vmax.f32 %v1122, 0.0
      %v1187 = vmax.f32 %v1123, 0.0
      %v1188 = vmax.f32 %v1124, 0.0
      %v1189 = vmax.f32 %v1125, 0.0
      %v1190 = vmax.f32 %v1126, 0.0
      %v1191 = vmax.f32 %v1127, 0.0
      %v1192 = vpack.c.bf16 %v1130, %v1128
      %v1193 = vpack.c.bf16 %v1131, %v1129
      %v1194 = vpack.c.bf16 %v1134, %v1132
      %v1195 = vpack.c.bf16 %v1135, %v1133
      %v1196 = vpack.c.bf16 %v1138, %v1136
      %v1197 = vpack.c.bf16 %v1139, %v1137
      %v1198 = vpack.c.bf16 %v1142, %v1140
      %v1199 = vpack.c.bf16 %v1143, %v1141
      %v1200 = vpack.c.bf16 %v1146, %v1144
      %v1201 = vpack.c.bf16 %v1147, %v1145
      %v1202 = vpack.c.bf16 %v1150, %v1148
      %v1203 = vpack.c.bf16 %v1151, %v1149
      %v1204 = vpack.c.bf16 %v1154, %v1152
      %v1205 = vpack.c.bf16 %v1155, %v1153
      %v1206 = vpack.c.bf16 %v1158, %v1156
      %v1207 = vpack.c.bf16 %v1159, %v1157
      %v1208 = vpack.c.bf16 %v1162, %v1160
      %v1209 = vpack.c.bf16 %v1163, %v1161
      %v1210 = vpack.c.bf16 %v1166, %v1164
      %v1211 = vpack.c.bf16 %v1167, %v1165
      %v1212 = vpack.c.bf16 %v1170, %v1168
      %v1213 = vpack.c.bf16 %v1171, %v1169
      %v1214 = vpack.c.bf16 %v1174, %v1172
      %v1215 = vpack.c.bf16 %v1175, %v1173
      %v1216 = vpack.c.bf16 %v1178, %v1176
      %v1217 = vpack.c.bf16 %v1179, %v1177
      %v1218 = vpack.c.bf16 %v1182, %v1180
      %v1219 = vpack.c.bf16 %v1183, %v1181
      %v1220 = vpack.c.bf16 %v1186, %v1184
      %v1221 = vpack.c.bf16 %v1187, %v1185
      %v1222 = vpack.c.bf16 %v1190, %v1188
      %v1223 = vpack.c.bf16 %v1191, %v1189
      %v1224 = vld [vmem:[%s2] sm:$0xff]
      %v1225 = vld [vmem:[%s2 + $0x8] sm:$0xff]
      %v1226 = vld [vmem:[%s2 + $0x10] sm:$0xff]
      %v1227 = vld [vmem:[%s2 + $0x18] sm:$0xff]
      %v1232 = vunpack.c.l.b16 %v1224
      %v1233 = vunpack.c.h.b16 %v1224
      %v1234 = vunpack.c.l.b16 %v1225
      %v1235 = vunpack.c.h.b16 %v1225
      %v1236 = vunpack.c.l.b16 %v1226
      %v1237 = vunpack.c.h.b16 %v1226
      %v1238 = vunpack.c.l.b16 %v1227
      %v1239 = vunpack.c.h.b16 %v1227
      %v1240 = vpack.c.b16 %v1234, %v1232
      %v1241 = vpack.c.b16 %v1235, %v1233
      %v1242 = vpack.c.b16 %v1238, %v1236
      %v1243 = vpack.c.b16 %v1239, %v1237
      %1248 = vmatpush.bf16.msra.mxu0 %v1206
      %1249 = vmatpush.bf16.msra.mxu0 %v1204
      %1250 = vmatpush.bf16.msra.mxu0 %v1202
      %1251 = vmatpush.bf16.msra.mxu0 %v1200
      %1252 = vmatpush.bf16.msra.mxu0 %v1198
      %1253 = vmatpush.bf16.msra.mxu0 %v1196
      %1254 = vmatpush.bf16.msra.mxu0 %v1194
      %1255 = vmatpush.bf16.msra.mxu0 %v1192
      %1256 = vmatmul.bf16.gmra.mxu0 %v1240
      %v1257 = vpop.f32.mrf.mxu0
      %v1258 = vadd.f32 0.0, %v1257
      %v1259 = vpop.f32.mrf.mxu0
      %v1260 = vadd.f32 0.0, %v1259
      %1261 = vmatmul.bf16.gmra.mxu0 %v1242
      %v1262 = vpop.f32.mrf.mxu0
      %v1263 = vadd.f32 0.0, %v1262
      %v1264 = vpop.f32.mrf.mxu0
      %v1265 = vadd.f32 0.0, %v1264
      %1266 = vdwg.mxu0
      %1267 = vmatpush.bf16.msra.mxu0 %v1222
      %1268 = vmatpush.bf16.msra.mxu0 %v1220
      %1269 = vmatpush.bf16.msra.mxu0 %v1218
      %1270 = vmatpush.bf16.msra.mxu0 %v1216
      %1271 = vmatpush.bf16.msra.mxu0 %v1214
      %1272 = vmatpush.bf16.msra.mxu0 %v1212
      %1273 = vmatpush.bf16.msra.mxu0 %v1210
      %1274 = vmatpush.bf16.msra.mxu0 %v1208
      %1275 = vmatmul.bf16.gmra.mxu0 %v1241
      %v1276 = vpop.f32.mrf.mxu0
      %v1277 = vadd.f32 %v1258, %v1276
      %v1278 = vpop.f32.mrf.mxu0
      %v1279 = vadd.f32 %v1260, %v1278
      %1280 = vmatmul.bf16.gmra.mxu0 %v1243
      %v1281 = vpop.f32.mrf.mxu0
      %v1282 = vadd.f32 %v1263, %v1281
      %v1283 = vpop.f32.mrf.mxu0
      %v1284 = vadd.f32 %v1265, %v1283
      %1285 = vdwg.mxu0
      %1286 = vmatpush.bf16.msra.mxu0 %v1207
      %1287 = vmatpush.bf16.msra.mxu0 %v1205
      %1288 = vmatpush.bf16.msra.mxu0 %v1203
      %1289 = vmatpush.bf16.msra.mxu0 %v1201
      %1290 = vmatpush.bf16.msra.mxu0 %v1199
      %1291 = vmatpush.bf16.msra.mxu0 %v1197
      %1292 = vmatpush.bf16.msra.mxu0 %v1195
      %1293 = vmatpush.bf16.msra.mxu0 %v1193
      %1294 = vmatmul.bf16.gmra.mxu0 %v1240
      %v1295 = vpop.f32.mrf.mxu0
      %v1296 = vadd.f32 0.0, %v1295
      %v1297 = vpop.f32.mrf.mxu0
      %v1298 = vadd.f32 0.0, %v1297
      %1299 = vmatmul.bf16.gmra.mxu0 %v1242
      %v1300 = vpop.f32.mrf.mxu0
      %v1301 = vadd.f32 0.0, %v1300
      %v1302 = vpop.f32.mrf.mxu0
      %v1303 = vadd.f32 0.0, %v1302
      %1304 = vdwg.mxu0
      %1305 = vmatpush.bf16.msra.mxu0 %v1223
      %1306 = vmatpush.bf16.msra.mxu0 %v1221
      %1307 = vmatpush.bf16.msra.mxu0 %v1219
      %1308 = vmatpush.bf16.msra.mxu0 %v1217
      %1309 = vmatpush.bf16.msra.mxu0 %v1215
      %1310 = vmatpush.bf16.msra.mxu0 %v1213
      %1311 = vmatpush.bf16.msra.mxu0 %v1211
      %1312 = vmatpush.bf16.msra.mxu0 %v1209
      %1313 = vmatmul.bf16.gmra.mxu0 %v1241
      %v1314 = vpop.f32.mrf.mxu0
      %v1315 = vadd.f32 %v1296, %v1314
      %v1316 = vpop.f32.mrf.mxu0
      %v1317 = vadd.f32 %v1298, %v1316
      %1318 = vmatmul.bf16.gmra.mxu0 %v1243
      %v1319 = vpop.f32.mrf.mxu0
      %v1320 = vadd.f32 %v1301, %v1319
      %v1321 = vpop.f32.mrf.mxu0
      %v1322 = vadd.f32 %v1303, %v1321
      %1323 = vdwg.mxu0
      %1324 = vst [vmem:[%s262] sm:$0xff] %v1277
      %1325 = vst [vmem:[%s262 + $0x8] sm:$0xff] %v1315
      %1326 = vst [vmem:[%s262 + $0x10] sm:$0xff] %v1279
      %1327 = vst [vmem:[%s262 + $0x18] sm:$0xff] %v1317
      %1328 = vst [vmem:[%s262 + $0x20] sm:$0xff] %v1282
      %1329 = vst [vmem:[%s262 + $0x28] sm:$0xff] %v1320
      %1330 = vst [vmem:[%s262 + $0x30] sm:$0xff] %v1284
      %1331 = vst [vmem:[%s262 + $0x38] sm:$0xff] %v1322
      %s1332 = smul.u32 2, %s21
      %p1333 = scmp.lt.s32.totalorder %s20, 1
      %s1334 = scalar_select %p1333, %s20, 1
      %p1335 = scmp.lt.s32.totalorder %s1332, 1
      %s1336 = scalar_select %p1335, %s1332, 1
      %s1337 = smul.addr %s1334, 8
      %s1338 = sadd.s32 %s1336, %s1337
      %s1339 = smul.addr %s1338, 8
      %s1340 = scalar_lea.vmem %s5, %s1339
      // Predicated region
      $region41: #{predictor_forward.3} parent=39 // pred_check
        %p1341 = pneg %p160
      $region42: #{predictor_forward.3} parent=39 // pred_check_branch
        %1343 = sbr.rel (%p1341) target = $region44
      $region43: #{predictor_forward.3} parent=39 // pred_region
        %s1344 = smul.u32 2, %s21
      $region44: #{predictor_forward.3} parent=39 // pred_fallthru
        _
    $region40: #{predictor_forward.3} parent=5 // pred_fallthru
      _
    %p1345 = scmp.le.s32.totalorder 2, %s11
    // Predicated region
    $region45: #{predictor_forward.3} parent=5 // pred_check
      %p1346 = pneg %p1345
    $region46: #{predictor_forward.3} parent=5 // pred_check_branch
      %1348 = sbr.rel (%p1346) target = $region48
    $region47: #{predictor_forward.3} parent=5 // pred_region
      %s1349 = ssub.s32 %s11, 2
      // Predicated region
      $region49: #{predictor_forward.3} parent=47 // pred_check
        %p1350 = pneg %p166
      $region50: #{predictor_forward.3} parent=47 // pred_check_branch
        %1352 = sbr.rel (%p1350) target = $region52
      $region51: #{predictor_forward.3} parent=47 // pred_region
        %s1353 = smul.u32 2, %s23
        %p1354 = scmp.lt.s32.totalorder %s22, 1
        %s1355 = scalar_select %p1354, %s22, 1
        %p1356 = scmp.lt.s32.totalorder %s1353, 1
        %s1357 = scalar_select %p1356, %s1353, 1
        %s1358 = smul.addr %s1355, 8
        %s1359 = sadd.s32 %s1357, %s1358
        %s1360 = smul.addr %s1359, 8
        %s1361 = scalar_lea.vmem %s5, %s1360
      $region52: #{predictor_forward.3} parent=47 // pred_fallthru
        _
    $region48: #{predictor_forward.3} parent=5 // pred_fallthru
      _
  $region6: #{predictor_forward.3} parent=0 // loop_footer
    %s15 = sadd.s32 1, %s11
  $region7: #{predictor_forward.3} parent=0 // loop_footer_branch
    %10 = sbr.rel target = $region3
  $region8: #{predictor_forward.3} parent=0 // loop_exit
    _

</llo_original>
